<compile_context>
chip_gen: v6e
topology: v6e:2x2x1
jax: 0.10.0
libtpu: 0.0.40
codegen_flags: <defaults>
</compile_context>

<pallas_src>
import functools

import jax
import jax.numpy as jnp
from jax import lax
from jax.experimental import pallas as pl
from jax.experimental.pallas import tpu as pltpu

_EPS = 1e-5
_LANE = 128


def _act(v):
    # relu6( v * clamp(v + 3, 0, 6) / 6 )
    h = v * jnp.clip(v + 3.0, 0.0, 6.0) * (1.0 / 6.0)
    return jnp.clip(h, 0.0, 6.0)


def fused_kernel(x_ref, w1_ref, b1_ref, w2_ref, b2_ref, g_ref, beta_ref,
                 o_int_ref, o_ring_ref, *, count_ring1, count_ring2, inv_total):
    """conv1 -> act -> conv2 -> act -> BatchNorm over the interior pixels.

    x_ref      : (C, R, 128) f32 VMEM  -- channel-major, lane-dense interior
    w1,w2      : (C, C) f32 SMEM       -- 1x1 conv weights [out, in]
    b1,b2,g,beta : (C,) f32 SMEM
    o_int_ref  : (C, R, 128) f32 VMEM  -- BN-normalized interior
    o_ring_ref : (2C, 128) f32 VMEM    -- rows 0..C-1: normalized outermost-ring
                                          constant; rows C..2C-1: inner ring.
    """
    C, R, L = x_ref.shape

    # ---- stage 1: conv1 (1x1 == per-pixel channel mix) + hswish/relu6 -------
    xs = [x_ref[c] for c in range(C)]                      # C x (R, L), dense
    v7 = []
    for c in range(C):
        acc = w1_ref[c, 0] * xs[0]
        for k in range(1, C):
            acc = acc + w1_ref[c, k] * xs[k]
        v7.append(_act(acc + b1_ref[c]))

    # Value of v7 on conv1's zero-pad ring: act(b1), per input channel.
    a1 = [_act(jnp.full((1, 1), b1_ref[k], dtype=jnp.float32)) for k in range(C)]

    # ---- stage 2: conv2 + hswish/relu6 + BatchNorm, per output channel ------
    for c in range(C):
        acc = w2_ref[c, 0] * v7[0]
        for k in range(1, C):
            acc = acc + w2_ref[c, k] * v7[k]
        v14 = _act(acc + b2_ref[c])                        # (R, L) interior

        # Constant ring values of v14 for this output channel.
        k1 = _act(jnp.full((1, 1), b2_ref[c], dtype=jnp.float32))   # outermost
        acc_r = jnp.full((1, 1), b2_ref[c], dtype=jnp.float32)
        for k in range(C):
            acc_r = acc_r + w2_ref[c, k] * a1[k]
        k2 = _act(acc_r)                                            # inner ring

        # BatchNorm sums: one fused lane-reduce pass over [v14 ; v14^2],
        # plus the analytic contributions of the two constant rings.
        stacked = jnp.concatenate([v14, v14 * v14], axis=0)         # (2R, L)
        col = jnp.sum(stacked, axis=1, keepdims=True)               # (2R, 1)
        s = (jnp.sum(col[:R, :], keepdims=True)
             + count_ring1 * k1 + count_ring2 * k2)
        s2 = (jnp.sum(col[R:, :], keepdims=True)
              + count_ring1 * k1 * k1 + count_ring2 * k2 * k2)

        mean = s * inv_total
        var = jnp.maximum(s2 * inv_total - mean * mean, 0.0)
        scale = g_ref[c] * lax.rsqrt(var + _EPS)                    # (1, 1)
        shift = beta_ref[c] - mean * scale                          # (1, 1)

        o_int_ref[c] = v14 * scale + shift
        o_ring_ref[pl.ds(c, 1), :] = jnp.broadcast_to(k1 * scale + shift, (1, L))
        o_ring_ref[pl.ds(C + c, 1), :] = jnp.broadcast_to(k2 * scale + shift, (1, L))


def _smem_spec():
    return pl.BlockSpec(memory_space=pltpu.MemorySpace.SMEM)


@jax.jit
def model_forward(x, w1, b1, w2, b2, gamma, beta):
    """x: (N, C, H, W) f32 NCHW.  Returns (N, C, H+4, W+4, 1, 1)."""
    N, C, H, W = x.shape
    Ho, Wo = H + 4, W + 4
    tot = N * H * W
    R = -(-tot // _LANE)
    n_pad = R * _LANE - tot

    # Channel-major, lane-dense interior layout (cheap host-side relayout).
    x_flat = jnp.transpose(x, (1, 0, 2, 3)).reshape(C, tot)
    if n_pad:
        # Zero-padded pixels flow to the inner-ring constant k2 through the
        # conv chain; that is compensated in count_ring2 below.
        x_flat = jnp.pad(x_flat, ((0, 0), (0, n_pad)))
    xc = x_flat.reshape(C, R, _LANE)

    count_ring1 = float(N * (2 * H + 2 * W + 12))          # outermost 1-px ring
    count_ring2 = float(N * (2 * H + 2 * W + 4) - n_pad)   # conv1-pad ring
    inv_total = 1.0 / float(N * Ho * Wo)

    kernel = functools.partial(fused_kernel,
                               count_ring1=count_ring1,
                               count_ring2=count_ring2,
                               inv_total=inv_total)

    out_int, ring = pl.pallas_call(
        kernel,
        out_shape=(jax.ShapeDtypeStruct((C, R, _LANE), jnp.float32),
                   jax.ShapeDtypeStruct((2 * C, _LANE), jnp.float32)),
        in_specs=[
            pl.BlockSpec((C, R, _LANE), lambda: (0, 0, 0)),
            _smem_spec(), _smem_spec(), _smem_spec(),
            _smem_spec(), _smem_spec(), _smem_spec(),
        ],
        out_specs=(
            pl.BlockSpec((C, R, _LANE), lambda: (0, 0, 0)),
            pl.BlockSpec((2 * C, _LANE), lambda: (0, 0)),
        ),
    )(xc, w1, b1, w2, b2, gamma, beta)

    # Host-side assembly: interior back to NCHW + the two constant border rings.
    interior = (out_int.reshape(C, R * _LANE)[:, :tot]
                .reshape(C, N, H, W).transpose(1, 0, 2, 3))
    r1 = ring[0:C, 0][None, :, None, None]          # normalized outermost ring
    r2 = ring[C:2 * C, 0][None, :, None, None]      # normalized inner ring
    out = jnp.broadcast_to(r1, (N, C, Ho, Wo))
    out = lax.dynamic_update_slice(
        out, jnp.broadcast_to(r2, (N, C, H + 2, W + 2)), (0, 0, 1, 1))
    out = lax.dynamic_update_slice(out, interior, (0, 0, 2, 2))

    # v15.unsqueeze(-1).unsqueeze(-1)
    return out[..., None, None]


def _reference(x, w1, b1, w2, b2, gamma, beta):
    """Pure-JAX reference matching the PyTorch forward (training-mode BN)."""
    def act(v):
        return jnp.clip(v * jnp.clip(v + 3.0, 0.0, 6.0) / 6.0, 0.0, 6.0)

    xp = jnp.pad(x, ((0, 0), (0, 0), (1, 1), (1, 1)))
    v1 = jnp.einsum('oc,nchw->nohw', w1, xp) + b1[None, :, None, None]
    v7 = act(v1)
    v7p = jnp.pad(v7, ((0, 0), (0, 0), (1, 1), (1, 1)))
    v8 = jnp.einsum('oc,nchw->nohw', w2, v7p) + b2[None, :, None, None]
    v14 = act(v8)
    mean = v14.mean(axis=(0, 2, 3), keepdims=True)
    var = ((v14 - mean) ** 2).mean(axis=(0, 2, 3), keepdims=True)
    out = ((v14 - mean) / jnp.sqrt(var + _EPS)
           * gamma[None, :, None, None] + beta[None, :, None, None])
    return out[..., None, None]


if __name__ == "__main__":
    key = jax.random.PRNGKey(0)
    k_x, k_w1, k_b1, k_w2, k_b2 = jax.random.split(key, 5)

    N, C, H, W = 2, 3, 32, 32
    x1 = jax.random.normal(k_x, (N, C, H, W), dtype=jnp.float32)

    # Conv2d(3, 3, 1) weights are (3, 3, 1, 1) -> stored as (3, 3).
    w1 = 0.3 * jax.random.normal(k_w1, (C, C), dtype=jnp.float32)
    b1 = 0.1 * jax.random.normal(k_b1, (C,), dtype=jnp.float32)
    w2 = 0.3 * jax.random.normal(k_w2, (C, C), dtype=jnp.float32)
    b2 = 0.1 * jax.random.normal(k_b2, (C,), dtype=jnp.float32)
    gamma = jnp.ones((C,), dtype=jnp.float32)   # BatchNorm2d default weight
    beta = jnp.zeros((C,), dtype=jnp.float32)   # BatchNorm2d default bias

    out = model_forward(x1, w1, b1, w2, b2, gamma, beta)
    jax.block_until_ready(out)
    assert out.shape == (N, C, H + 4, W + 4, 1, 1), out.shape

    ref = _reference(x1, w1, b1, w2, b2, gamma, beta)
    max_err = float(jnp.max(jnp.abs(out - ref)))
    assert max_err < 2e-3, max_err

    print("KERNEL_OK")
</pallas_src>

<mosaic_0001>
module attributes {stable_mosaic.version = 11 : i64} {
  func.func @fused_kernel(%arg0: memref<3x16x128xf32, #tpu.memory_space<vmem>>, %arg1: memref<3x3xf32, #tpu.memory_space<smem>>, %arg2: memref<3xf32, #tpu.memory_space<smem>>, %arg3: memref<3x3xf32, #tpu.memory_space<smem>>, %arg4: memref<3xf32, #tpu.memory_space<smem>>, %arg5: memref<3xf32, #tpu.memory_space<smem>>, %arg6: memref<3xf32, #tpu.memory_space<smem>>, %arg7: memref<3x16x128xf32, #tpu.memory_space<vmem>>, %arg8: memref<6x128xf32, #tpu.memory_space<vmem>>) attributes {dimension_semantics = [], scalar_prefetch = 0 : i64, scratch_operands = 0 : i64, tpu.core_type = #tpu.core_type<tc>} {
    %c0 = arith.constant 0 : index
    %c0_0 = arith.constant 0 : index
    %c0_1 = arith.constant 0 : index
    %0 = vector.load %arg0[%c0, %c0_0, %c0_1] : memref<3x16x128xf32, #tpu.memory_space<vmem>>, vector<1x16x128xf32>
    %1 = vector.shape_cast %0 : vector<1x16x128xf32> to vector<16x128xf32>
    %c1 = arith.constant 1 : index
    %c0_2 = arith.constant 0 : index
    %c0_3 = arith.constant 0 : index
    %2 = vector.load %arg0[%c1, %c0_2, %c0_3] : memref<3x16x128xf32, #tpu.memory_space<vmem>>, vector<1x16x128xf32>
    %3 = vector.shape_cast %2 : vector<1x16x128xf32> to vector<16x128xf32>
    %c2 = arith.constant 2 : index
    %c0_4 = arith.constant 0 : index
    %c0_5 = arith.constant 0 : index
    %4 = vector.load %arg0[%c2, %c0_4, %c0_5] : memref<3x16x128xf32, #tpu.memory_space<vmem>>, vector<1x16x128xf32>
    %5 = vector.shape_cast %4 : vector<1x16x128xf32> to vector<16x128xf32>
    %c0_6 = arith.constant 0 : index
    %c0_7 = arith.constant 0 : index
    %6 = memref.load %arg1[%c0_6, %c0_7] : memref<3x3xf32, #tpu.memory_space<smem>>
    %7 = vector.broadcast %6 : f32 to vector<16x128xf32>
    %8 = arith.mulf %7, %1 : vector<16x128xf32>
    %c0_8 = arith.constant 0 : index
    %c1_9 = arith.constant 1 : index
    %9 = memref.load %arg1[%c0_8, %c1_9] : memref<3x3xf32, #tpu.memory_space<smem>>
    %10 = vector.broadcast %9 : f32 to vector<16x128xf32>
    %11 = arith.mulf %10, %3 : vector<16x128xf32>
    %12 = arith.addf %8, %11 : vector<16x128xf32>
    %c0_10 = arith.constant 0 : index
    %c2_11 = arith.constant 2 : index
    %13 = memref.load %arg1[%c0_10, %c2_11] : memref<3x3xf32, #tpu.memory_space<smem>>
    %14 = vector.broadcast %13 : f32 to vector<16x128xf32>
    %15 = arith.mulf %14, %5 : vector<16x128xf32>
    %16 = arith.addf %12, %15 : vector<16x128xf32>
    %c0_12 = arith.constant 0 : index
    %17 = memref.load %arg2[%c0_12] : memref<3xf32, #tpu.memory_space<smem>>
    %18 = vector.broadcast %17 : f32 to vector<16x128xf32>
    %19 = arith.addf %16, %18 : vector<16x128xf32>
    %cst = arith.constant 3.000000e+00 : f32
    %20 = vector.broadcast %cst : f32 to vector<16x128xf32>
    %21 = arith.addf %19, %20 : vector<16x128xf32>
    %cst_13 = arith.constant 0.000000e+00 : f32
    %cst_14 = arith.constant 6.000000e+00 : f32
    %22 = vector.broadcast %cst_13 : f32 to vector<16x128xf32>
    %23 = arith.maximumf %22, %21 : vector<16x128xf32>
    %24 = vector.broadcast %cst_14 : f32 to vector<16x128xf32>
    %25 = arith.minimumf %24, %23 : vector<16x128xf32>
    %26 = arith.mulf %19, %25 : vector<16x128xf32>
    %cst_15 = arith.constant 0.166666672 : f32
    %27 = vector.broadcast %cst_15 : f32 to vector<16x128xf32>
    %28 = arith.mulf %26, %27 : vector<16x128xf32>
    %cst_16 = arith.constant 0.000000e+00 : f32
    %cst_17 = arith.constant 6.000000e+00 : f32
    %29 = vector.broadcast %cst_16 : f32 to vector<16x128xf32>
    %30 = arith.maximumf %29, %28 : vector<16x128xf32>
    %31 = vector.broadcast %cst_17 : f32 to vector<16x128xf32>
    %32 = arith.minimumf %31, %30 : vector<16x128xf32>
    %c1_18 = arith.constant 1 : index
    %c0_19 = arith.constant 0 : index
    %33 = memref.load %arg1[%c1_18, %c0_19] : memref<3x3xf32, #tpu.memory_space<smem>>
    %34 = vector.broadcast %33 : f32 to vector<16x128xf32>
    %35 = arith.mulf %34, %1 : vector<16x128xf32>
    %c1_20 = arith.constant 1 : index
    %c1_21 = arith.constant 1 : index
    %36 = memref.load %arg1[%c1_20, %c1_21] : memref<3x3xf32, #tpu.memory_space<smem>>
    %37 = vector.broadcast %36 : f32 to vector<16x128xf32>
    %38 = arith.mulf %37, %3 : vector<16x128xf32>
    %39 = arith.addf %35, %38 : vector<16x128xf32>
    %c1_22 = arith.constant 1 : index
    %c2_23 = arith.constant 2 : index
    %40 = memref.load %arg1[%c1_22, %c2_23] : memref<3x3xf32, #tpu.memory_space<smem>>
    %41 = vector.broadcast %40 : f32 to vector<16x128xf32>
    %42 = arith.mulf %41, %5 : vector<16x128xf32>
    %43 = arith.addf %39, %42 : vector<16x128xf32>
    %c1_24 = arith.constant 1 : index
    %44 = memref.load %arg2[%c1_24] : memref<3xf32, #tpu.memory_space<smem>>
    %45 = vector.broadcast %44 : f32 to vector<16x128xf32>
    %46 = arith.addf %43, %45 : vector<16x128xf32>
    %cst_25 = arith.constant 3.000000e+00 : f32
    %47 = vector.broadcast %cst_25 : f32 to vector<16x128xf32>
    %48 = arith.addf %46, %47 : vector<16x128xf32>
    %cst_26 = arith.constant 0.000000e+00 : f32
    %cst_27 = arith.constant 6.000000e+00 : f32
    %49 = vector.broadcast %cst_26 : f32 to vector<16x128xf32>
    %50 = arith.maximumf %49, %48 : vector<16x128xf32>
    %51 = vector.broadcast %cst_27 : f32 to vector<16x128xf32>
    %52 = arith.minimumf %51, %50 : vector<16x128xf32>
    %53 = arith.mulf %46, %52 : vector<16x128xf32>
    %cst_28 = arith.constant 0.166666672 : f32
    %54 = vector.broadcast %cst_28 : f32 to vector<16x128xf32>
    %55 = arith.mulf %53, %54 : vector<16x128xf32>
    %cst_29 = arith.constant 0.000000e+00 : f32
    %cst_30 = arith.constant 6.000000e+00 : f32
    %56 = vector.broadcast %cst_29 : f32 to vector<16x128xf32>
    %57 = arith.maximumf %56, %55 : vector<16x128xf32>
    %58 = vector.broadcast %cst_30 : f32 to vector<16x128xf32>
    %59 = arith.minimumf %58, %57 : vector<16x128xf32>
    %c2_31 = arith.constant 2 : index
    %c0_32 = arith.constant 0 : index
    %60 = memref.load %arg1[%c2_31, %c0_32] : memref<3x3xf32, #tpu.memory_space<smem>>
    %61 = vector.broadcast %60 : f32 to vector<16x128xf32>
    %62 = arith.mulf %61, %1 : vector<16x128xf32>
    %c2_33 = arith.constant 2 : index
    %c1_34 = arith.constant 1 : index
    %63 = memref.load %arg1[%c2_33, %c1_34] : memref<3x3xf32, #tpu.memory_space<smem>>
    %64 = vector.broadcast %63 : f32 to vector<16x128xf32>
    %65 = arith.mulf %64, %3 : vector<16x128xf32>
    %66 = arith.addf %62, %65 : vector<16x128xf32>
    %c2_35 = arith.constant 2 : index
    %c2_36 = arith.constant 2 : index
    %67 = memref.load %arg1[%c2_35, %c2_36] : memref<3x3xf32, #tpu.memory_space<smem>>
    %68 = vector.broadcast %67 : f32 to vector<16x128xf32>
    %69 = arith.mulf %68, %5 : vector<16x128xf32>
    %70 = arith.addf %66, %69 : vector<16x128xf32>
    %c2_37 = arith.constant 2 : index
    %71 = memref.load %arg2[%c2_37] : memref<3xf32, #tpu.memory_space<smem>>
    %72 = vector.broadcast %71 : f32 to vector<16x128xf32>
    %73 = arith.addf %70, %72 : vector<16x128xf32>
    %cst_38 = arith.constant 3.000000e+00 : f32
    %74 = vector.broadcast %cst_38 : f32 to vector<16x128xf32>
    %75 = arith.addf %73, %74 : vector<16x128xf32>
    %cst_39 = arith.constant 0.000000e+00 : f32
    %cst_40 = arith.constant 6.000000e+00 : f32
    %76 = vector.broadcast %cst_39 : f32 to vector<16x128xf32>
    %77 = arith.maximumf %76, %75 : vector<16x128xf32>
    %78 = vector.broadcast %cst_40 : f32 to vector<16x128xf32>
    %79 = arith.minimumf %78, %77 : vector<16x128xf32>
    %80 = arith.mulf %73, %79 : vector<16x128xf32>
    %cst_41 = arith.constant 0.166666672 : f32
    %81 = vector.broadcast %cst_41 : f32 to vector<16x128xf32>
    %82 = arith.mulf %80, %81 : vector<16x128xf32>
    %cst_42 = arith.constant 0.000000e+00 : f32
    %cst_43 = arith.constant 6.000000e+00 : f32
    %83 = vector.broadcast %cst_42 : f32 to vector<16x128xf32>
    %84 = arith.maximumf %83, %82 : vector<16x128xf32>
    %85 = vector.broadcast %cst_43 : f32 to vector<16x128xf32>
    %86 = arith.minimumf %85, %84 : vector<16x128xf32>
    %c0_44 = arith.constant 0 : index
    %87 = memref.load %arg2[%c0_44] : memref<3xf32, #tpu.memory_space<smem>>
    %88 = vector.broadcast %87 : f32 to vector<1x1xf32>
    %cst_45 = arith.constant 3.000000e+00 : f32
    %89 = vector.broadcast %cst_45 : f32 to vector<1x1xf32>
    %90 = arith.addf %88, %89 : vector<1x1xf32>
    %cst_46 = arith.constant 0.000000e+00 : f32
    %cst_47 = arith.constant 6.000000e+00 : f32
    %91 = vector.broadcast %cst_46 : f32 to vector<1x1xf32>
    %92 = arith.maximumf %91, %90 : vector<1x1xf32>
    %93 = vector.broadcast %cst_47 : f32 to vector<1x1xf32>
    %94 = arith.minimumf %93, %92 : vector<1x1xf32>
    %95 = arith.mulf %88, %94 : vector<1x1xf32>
    %cst_48 = arith.constant 0.166666672 : f32
    %96 = vector.broadcast %cst_48 : f32 to vector<1x1xf32>
    %97 = arith.mulf %95, %96 : vector<1x1xf32>
    %cst_49 = arith.constant 0.000000e+00 : f32
    %cst_50 = arith.constant 6.000000e+00 : f32
    %98 = vector.broadcast %cst_49 : f32 to vector<1x1xf32>
    %99 = arith.maximumf %98, %97 : vector<1x1xf32>
    %100 = vector.broadcast %cst_50 : f32 to vector<1x1xf32>
    %101 = arith.minimumf %100, %99 : vector<1x1xf32>
    %c1_51 = arith.constant 1 : index
    %102 = memref.load %arg2[%c1_51] : memref<3xf32, #tpu.memory_space<smem>>
    %103 = vector.broadcast %102 : f32 to vector<1x1xf32>
    %cst_52 = arith.constant 3.000000e+00 : f32
    %104 = vector.broadcast %cst_52 : f32 to vector<1x1xf32>
    %105 = arith.addf %103, %104 : vector<1x1xf32>
    %cst_53 = arith.constant 0.000000e+00 : f32
    %cst_54 = arith.constant 6.000000e+00 : f32
    %106 = vector.broadcast %cst_53 : f32 to vector<1x1xf32>
    %107 = arith.maximumf %106, %105 : vector<1x1xf32>
    %108 = vector.broadcast %cst_54 : f32 to vector<1x1xf32>
    %109 = arith.minimumf %108, %107 : vector<1x1xf32>
    %110 = arith.mulf %103, %109 : vector<1x1xf32>
    %cst_55 = arith.constant 0.166666672 : f32
    %111 = vector.broadcast %cst_55 : f32 to vector<1x1xf32>
    %112 = arith.mulf %110, %111 : vector<1x1xf32>
    %cst_56 = arith.constant 0.000000e+00 : f32
    %cst_57 = arith.constant 6.000000e+00 : f32
    %113 = vector.broadcast %cst_56 : f32 to vector<1x1xf32>
    %114 = arith.maximumf %113, %112 : vector<1x1xf32>
    %115 = vector.broadcast %cst_57 : f32 to vector<1x1xf32>
    %116 = arith.minimumf %115, %114 : vector<1x1xf32>
    %c2_58 = arith.constant 2 : index
    %117 = memref.load %arg2[%c2_58] : memref<3xf32, #tpu.memory_space<smem>>
    %118 = vector.broadcast %117 : f32 to vector<1x1xf32>
    %cst_59 = arith.constant 3.000000e+00 : f32
    %119 = vector.broadcast %cst_59 : f32 to vector<1x1xf32>
    %120 = arith.addf %118, %119 : vector<1x1xf32>
    %cst_60 = arith.constant 0.000000e+00 : f32
    %cst_61 = arith.constant 6.000000e+00 : f32
    %121 = vector.broadcast %cst_60 : f32 to vector<1x1xf32>
    %122 = arith.maximumf %121, %120 : vector<1x1xf32>
    %123 = vector.broadcast %cst_61 : f32 to vector<1x1xf32>
    %124 = arith.minimumf %123, %122 : vector<1x1xf32>
    %125 = arith.mulf %118, %124 : vector<1x1xf32>
    %cst_62 = arith.constant 0.166666672 : f32
    %126 = vector.broadcast %cst_62 : f32 to vector<1x1xf32>
    %127 = arith.mulf %125, %126 : vector<1x1xf32>
    %cst_63 = arith.constant 0.000000e+00 : f32
    %cst_64 = arith.constant 6.000000e+00 : f32
    %128 = vector.broadcast %cst_63 : f32 to vector<1x1xf32>
    %129 = arith.maximumf %128, %127 : vector<1x1xf32>
    %130 = vector.broadcast %cst_64 : f32 to vector<1x1xf32>
    %131 = arith.minimumf %130, %129 : vector<1x1xf32>
    %c0_65 = arith.constant 0 : index
    %c0_66 = arith.constant 0 : index
    %132 = memref.load %arg3[%c0_65, %c0_66] : memref<3x3xf32, #tpu.memory_space<smem>>
    %133 = vector.broadcast %132 : f32 to vector<16x128xf32>
    %134 = arith.mulf %133, %32 : vector<16x128xf32>
    %c0_67 = arith.constant 0 : index
    %c1_68 = arith.constant 1 : index
    %135 = memref.load %arg3[%c0_67, %c1_68] : memref<3x3xf32, #tpu.memory_space<smem>>
    %136 = vector.broadcast %135 : f32 to vector<16x128xf32>
    %137 = arith.mulf %136, %59 : vector<16x128xf32>
    %138 = arith.addf %134, %137 : vector<16x128xf32>
    %c0_69 = arith.constant 0 : index
    %c2_70 = arith.constant 2 : index
    %139 = memref.load %arg3[%c0_69, %c2_70] : memref<3x3xf32, #tpu.memory_space<smem>>
    %140 = vector.broadcast %139 : f32 to vector<16x128xf32>
    %141 = arith.mulf %140, %86 : vector<16x128xf32>
    %142 = arith.addf %138, %141 : vector<16x128xf32>
    %c0_71 = arith.constant 0 : index
    %143 = memref.load %arg4[%c0_71] : memref<3xf32, #tpu.memory_space<smem>>
    %144 = vector.broadcast %143 : f32 to vector<16x128xf32>
    %145 = arith.addf %142, %144 : vector<16x128xf32>
    %cst_72 = arith.constant 3.000000e+00 : f32
    %146 = vector.broadcast %cst_72 : f32 to vector<16x128xf32>
    %147 = arith.addf %145, %146 : vector<16x128xf32>
    %cst_73 = arith.constant 0.000000e+00 : f32
    %cst_74 = arith.constant 6.000000e+00 : f32
    %148 = vector.broadcast %cst_73 : f32 to vector<16x128xf32>
    %149 = arith.maximumf %148, %147 : vector<16x128xf32>
    %150 = vector.broadcast %cst_74 : f32 to vector<16x128xf32>
    %151 = arith.minimumf %150, %149 : vector<16x128xf32>
    %152 = arith.mulf %145, %151 : vector<16x128xf32>
    %cst_75 = arith.constant 0.166666672 : f32
    %153 = vector.broadcast %cst_75 : f32 to vector<16x128xf32>
    %154 = arith.mulf %152, %153 : vector<16x128xf32>
    %cst_76 = arith.constant 0.000000e+00 : f32
    %cst_77 = arith.constant 6.000000e+00 : f32
    %155 = vector.broadcast %cst_76 : f32 to vector<16x128xf32>
    %156 = arith.maximumf %155, %154 : vector<16x128xf32>
    %157 = vector.broadcast %cst_77 : f32 to vector<16x128xf32>
    %158 = arith.minimumf %157, %156 : vector<16x128xf32>
    %c0_78 = arith.constant 0 : index
    %159 = memref.load %arg4[%c0_78] : memref<3xf32, #tpu.memory_space<smem>>
    %160 = vector.broadcast %159 : f32 to vector<1x1xf32>
    %cst_79 = arith.constant 3.000000e+00 : f32
    %161 = vector.broadcast %cst_79 : f32 to vector<1x1xf32>
    %162 = arith.addf %160, %161 : vector<1x1xf32>
    %cst_80 = arith.constant 0.000000e+00 : f32
    %cst_81 = arith.constant 6.000000e+00 : f32
    %163 = vector.broadcast %cst_80 : f32 to vector<1x1xf32>
    %164 = arith.maximumf %163, %162 : vector<1x1xf32>
    %165 = vector.broadcast %cst_81 : f32 to vector<1x1xf32>
    %166 = arith.minimumf %165, %164 : vector<1x1xf32>
    %167 = arith.mulf %160, %166 : vector<1x1xf32>
    %cst_82 = arith.constant 0.166666672 : f32
    %168 = vector.broadcast %cst_82 : f32 to vector<1x1xf32>
    %169 = arith.mulf %167, %168 : vector<1x1xf32>
    %cst_83 = arith.constant 0.000000e+00 : f32
    %cst_84 = arith.constant 6.000000e+00 : f32
    %170 = vector.broadcast %cst_83 : f32 to vector<1x1xf32>
    %171 = arith.maximumf %170, %169 : vector<1x1xf32>
    %172 = vector.broadcast %cst_84 : f32 to vector<1x1xf32>
    %173 = arith.minimumf %172, %171 : vector<1x1xf32>
    %c0_85 = arith.constant 0 : index
    %174 = memref.load %arg4[%c0_85] : memref<3xf32, #tpu.memory_space<smem>>
    %175 = vector.broadcast %174 : f32 to vector<1x1xf32>
    %c0_86 = arith.constant 0 : index
    %c0_87 = arith.constant 0 : index
    %176 = memref.load %arg3[%c0_86, %c0_87] : memref<3x3xf32, #tpu.memory_space<smem>>
    %177 = vector.broadcast %176 : f32 to vector<1x1xf32>
    %178 = arith.mulf %177, %101 : vector<1x1xf32>
    %179 = arith.addf %175, %178 : vector<1x1xf32>
    %c0_88 = arith.constant 0 : index
    %c1_89 = arith.constant 1 : index
    %180 = memref.load %arg3[%c0_88, %c1_89] : memref<3x3xf32, #tpu.memory_space<smem>>
    %181 = vector.broadcast %180 : f32 to vector<1x1xf32>
    %182 = arith.mulf %181, %116 : vector<1x1xf32>
    %183 = arith.addf %179, %182 : vector<1x1xf32>
    %c0_90 = arith.constant 0 : index
    %c2_91 = arith.constant 2 : index
    %184 = memref.load %arg3[%c0_90, %c2_91] : memref<3x3xf32, #tpu.memory_space<smem>>
    %185 = vector.broadcast %184 : f32 to vector<1x1xf32>
    %186 = arith.mulf %185, %131 : vector<1x1xf32>
    %187 = arith.addf %183, %186 : vector<1x1xf32>
    %cst_92 = arith.constant 3.000000e+00 : f32
    %188 = vector.broadcast %cst_92 : f32 to vector<1x1xf32>
    %189 = arith.addf %187, %188 : vector<1x1xf32>
    %cst_93 = arith.constant 0.000000e+00 : f32
    %cst_94 = arith.constant 6.000000e+00 : f32
    %190 = vector.broadcast %cst_93 : f32 to vector<1x1xf32>
    %191 = arith.maximumf %190, %189 : vector<1x1xf32>
    %192 = vector.broadcast %cst_94 : f32 to vector<1x1xf32>
    %193 = arith.minimumf %192, %191 : vector<1x1xf32>
    %194 = arith.mulf %187, %193 : vector<1x1xf32>
    %cst_95 = arith.constant 0.166666672 : f32
    %195 = vector.broadcast %cst_95 : f32 to vector<1x1xf32>
    %196 = arith.mulf %194, %195 : vector<1x1xf32>
    %cst_96 = arith.constant 0.000000e+00 : f32
    %cst_97 = arith.constant 6.000000e+00 : f32
    %197 = vector.broadcast %cst_96 : f32 to vector<1x1xf32>
    %198 = arith.maximumf %197, %196 : vector<1x1xf32>
    %199 = vector.broadcast %cst_97 : f32 to vector<1x1xf32>
    %200 = arith.minimumf %199, %198 : vector<1x1xf32>
    %201 = arith.mulf %158, %158 : vector<16x128xf32>
    %202 = tpu.concatenate %158, %201 in 0 : vector<16x128xf32>, vector<16x128xf32> -> vector<32x128xf32>
    %cst_98 = arith.constant dense<0.000000e+00> : vector<32xf32>
    %203 = vector.multi_reduction <add>, %202, %cst_98 [1] : vector<32x128xf32> to vector<32xf32>
    %204 = vector.shape_cast %203 : vector<32xf32> to vector<32x1xf32>
    %205 = vector.extract_strided_slice %204 {offsets = [0, 0], sizes = [16, 1], strides = [1, 1]} : vector<32x1xf32> to vector<16x1xf32>
    %206 = vector.shape_cast %205 : vector<16x1xf32> to vector<1x16x1xf32>
    %cst_99 = arith.constant dense<0.000000e+00> : vector<1xf32>
    %207 = vector.multi_reduction <add>, %206, %cst_99 [1, 2] : vector<1x16x1xf32> to vector<1xf32>
    %208 = vector.shape_cast %207 : vector<1xf32> to vector<1x1x1xf32>
    %209 = vector.extract %208[0, 0, 0] : f32 from vector<1x1x1xf32>
    %210 = vector.broadcast %209 : f32 to vector<1x1xf32>
    %cst_100 = arith.constant 2.800000e+02 : f32
    %211 = vector.broadcast %cst_100 : f32 to vector<1x1xf32>
    %212 = arith.mulf %211, %173 : vector<1x1xf32>
    %213 = arith.addf %210, %212 : vector<1x1xf32>
    %cst_101 = arith.constant 2.640000e+02 : f32
    %214 = vector.broadcast %cst_101 : f32 to vector<1x1xf32>
    %215 = arith.mulf %214, %200 : vector<1x1xf32>
    %216 = arith.addf %213, %215 : vector<1x1xf32>
    %217 = vector.extract_strided_slice %204 {offsets = [16, 0], sizes = [16, 1], strides = [1, 1]} : vector<32x1xf32> to vector<16x1xf32>
    %218 = vector.shape_cast %217 : vector<16x1xf32> to vector<1x16x1xf32>
    %cst_102 = arith.constant dense<0.000000e+00> : vector<1xf32>
    %219 = vector.multi_reduction <add>, %218, %cst_102 [1, 2] : vector<1x16x1xf32> to vector<1xf32>
    %220 = vector.shape_cast %219 : vector<1xf32> to vector<1x1x1xf32>
    %221 = vector.extract %220[0, 0, 0] : f32 from vector<1x1x1xf32>
    %222 = vector.broadcast %221 : f32 to vector<1x1xf32>
    %cst_103 = arith.constant 2.800000e+02 : f32
    %223 = vector.broadcast %cst_103 : f32 to vector<1x1xf32>
    %224 = arith.mulf %223, %173 : vector<1x1xf32>
    %225 = arith.mulf %224, %173 : vector<1x1xf32>
    %226 = arith.addf %222, %225 : vector<1x1xf32>
    %cst_104 = arith.constant 2.640000e+02 : f32
    %227 = vector.broadcast %cst_104 : f32 to vector<1x1xf32>
    %228 = arith.mulf %227, %200 : vector<1x1xf32>
    %229 = arith.mulf %228, %200 : vector<1x1xf32>
    %230 = arith.addf %226, %229 : vector<1x1xf32>
    %cst_105 = arith.constant 3.85802472E-4 : f32
    %231 = vector.broadcast %cst_105 : f32 to vector<1x1xf32>
    %232 = arith.mulf %216, %231 : vector<1x1xf32>
    %cst_106 = arith.constant 3.85802472E-4 : f32
    %233 = vector.broadcast %cst_106 : f32 to vector<1x1xf32>
    %234 = arith.mulf %230, %233 : vector<1x1xf32>
    %235 = arith.mulf %232, %232 : vector<1x1xf32>
    %236 = arith.subf %234, %235 : vector<1x1xf32>
    %cst_107 = arith.constant 0.000000e+00 : f32
    %237 = vector.broadcast %cst_107 : f32 to vector<1x1xf32>
    %238 = arith.maximumf %236, %237 : vector<1x1xf32>
    %c0_108 = arith.constant 0 : index
    %239 = memref.load %arg5[%c0_108] : memref<3xf32, #tpu.memory_space<smem>>
    %cst_109 = arith.constant 9.99999974E-6 : f32
    %240 = vector.broadcast %cst_109 : f32 to vector<1x1xf32>
    %241 = arith.addf %238, %240 : vector<1x1xf32>
    %242 = math.rsqrt %241 : vector<1x1xf32>
    %243 = vector.broadcast %239 : f32 to vector<1x1xf32>
    %244 = arith.mulf %243, %242 : vector<1x1xf32>
    %c0_110 = arith.constant 0 : index
    %245 = memref.load %arg6[%c0_110] : memref<3xf32, #tpu.memory_space<smem>>
    %246 = arith.mulf %232, %244 : vector<1x1xf32>
    %247 = vector.broadcast %245 : f32 to vector<1x1xf32>
    %248 = arith.subf %247, %246 : vector<1x1xf32>
    %249 = vector.broadcast %244 : vector<1x1xf32> to vector<16x128xf32>
    %250 = arith.mulf %158, %249 : vector<16x128xf32>
    %251 = vector.broadcast %248 : vector<1x1xf32> to vector<16x128xf32>
    %252 = arith.addf %250, %251 : vector<16x128xf32>
    %c0_111 = arith.constant 0 : index
    %c0_112 = arith.constant 0 : index
    %c0_113 = arith.constant 0 : index
    %253 = vector.load %arg7[%c0_111, %c0_112, %c0_113] : memref<3x16x128xf32, #tpu.memory_space<vmem>>, vector<1x16x128xf32>
    %254 = vector.shape_cast %253 : vector<1x16x128xf32> to vector<16x128xf32>
    %255 = vector.shape_cast %252 : vector<16x128xf32> to vector<1x16x128xf32>
    tpu.vector_store %arg7[%c0_111, %c0_112, %c0_113], %255 {strides = array<i32>} : memref<3x16x128xf32, #tpu.memory_space<vmem>>, vector<1x16x128xf32>,
    %256 = arith.mulf %173, %244 : vector<1x1xf32>
    %257 = arith.addf %256, %248 : vector<1x1xf32>
    %258 = vector.shape_cast %257 : vector<1x1xf32> to vector<1x1xf32>
    %259 = vector.broadcast %258 : vector<1x1xf32> to vector<1x128xf32>
    %c0_114 = arith.constant 0 : index
    %c0_115 = arith.constant 0 : index
    %260 = vector.load %arg8[%c0_114, %c0_115] : memref<6x128xf32, #tpu.memory_space<vmem>>, vector<1x128xf32>
    tpu.vector_store %arg8[%c0_114, %c0_115], %259 {strides = array<i32>} : memref<6x128xf32, #tpu.memory_space<vmem>>, vector<1x128xf32>,
    %261 = arith.mulf %200, %244 : vector<1x1xf32>
    %262 = arith.addf %261, %248 : vector<1x1xf32>
    %263 = vector.shape_cast %262 : vector<1x1xf32> to vector<1x1xf32>
    %264 = vector.broadcast %263 : vector<1x1xf32> to vector<1x128xf32>
    %c3 = arith.constant 3 : index
    %c0_116 = arith.constant 0 : index
    %265 = vector.load %arg8[%c3, %c0_116] : memref<6x128xf32, #tpu.memory_space<vmem>>, vector<1x128xf32>
    tpu.vector_store %arg8[%c3, %c0_116], %264 {strides = array<i32>} : memref<6x128xf32, #tpu.memory_space<vmem>>, vector<1x128xf32>,
    %c1_117 = arith.constant 1 : index
    %c0_118 = arith.constant 0 : index
    %266 = memref.load %arg3[%c1_117, %c0_118] : memref<3x3xf32, #tpu.memory_space<smem>>
    %267 = vector.broadcast %266 : f32 to vector<16x128xf32>
    %268 = arith.mulf %267, %32 : vector<16x128xf32>
    %c1_119 = arith.constant 1 : index
    %c1_120 = arith.constant 1 : index
    %269 = memref.load %arg3[%c1_119, %c1_120] : memref<3x3xf32, #tpu.memory_space<smem>>
    %270 = vector.broadcast %269 : f32 to vector<16x128xf32>
    %271 = arith.mulf %270, %59 : vector<16x128xf32>
    %272 = arith.addf %268, %271 : vector<16x128xf32>
    %c1_121 = arith.constant 1 : index
    %c2_122 = arith.constant 2 : index
    %273 = memref.load %arg3[%c1_121, %c2_122] : memref<3x3xf32, #tpu.memory_space<smem>>
    %274 = vector.broadcast %273 : f32 to vector<16x128xf32>
    %275 = arith.mulf %274, %86 : vector<16x128xf32>
    %276 = arith.addf %272, %275 : vector<16x128xf32>
    %c1_123 = arith.constant 1 : index
    %277 = memref.load %arg4[%c1_123] : memref<3xf32, #tpu.memory_space<smem>>
    %278 = vector.broadcast %277 : f32 to vector<16x128xf32>
    %279 = arith.addf %276, %278 : vector<16x128xf32>
    %cst_124 = arith.constant 3.000000e+00 : f32
    %280 = vector.broadcast %cst_124 : f32 to vector<16x128xf32>
    %281 = arith.addf %279, %280 : vector<16x128xf32>
    %cst_125 = arith.constant 0.000000e+00 : f32
    %cst_126 = arith.constant 6.000000e+00 : f32
    %282 = vector.broadcast %cst_125 : f32 to vector<16x128xf32>
    %283 = arith.maximumf %282, %281 : vector<16x128xf32>
    %284 = vector.broadcast %cst_126 : f32 to vector<16x128xf32>
    %285 = arith.minimumf %284, %283 : vector<16x128xf32>
    %286 = arith.mulf %279, %285 : vector<16x128xf32>
    %cst_127 = arith.constant 0.166666672 : f32
    %287 = vector.broadcast %cst_127 : f32 to vector<16x128xf32>
    %288 = arith.mulf %286, %287 : vector<16x128xf32>
    %cst_128 = arith.constant 0.000000e+00 : f32
    %cst_129 = arith.constant 6.000000e+00 : f32
    %289 = vector.broadcast %cst_128 : f32 to vector<16x128xf32>
    %290 = arith.maximumf %289, %288 : vector<16x128xf32>
    %291 = vector.broadcast %cst_129 : f32 to vector<16x128xf32>
    %292 = arith.minimumf %291, %290 : vector<16x128xf32>
    %c1_130 = arith.constant 1 : index
    %293 = memref.load %arg4[%c1_130] : memref<3xf32, #tpu.memory_space<smem>>
    %294 = vector.broadcast %293 : f32 to vector<1x1xf32>
    %cst_131 = arith.constant 3.000000e+00 : f32
    %295 = vector.broadcast %cst_131 : f32 to vector<1x1xf32>
    %296 = arith.addf %294, %295 : vector<1x1xf32>
    %cst_132 = arith.constant 0.000000e+00 : f32
    %cst_133 = arith.constant 6.000000e+00 : f32
    %297 = vector.broadcast %cst_132 : f32 to vector<1x1xf32>
    %298 = arith.maximumf %297, %296 : vector<1x1xf32>
    %299 = vector.broadcast %cst_133 : f32 to vector<1x1xf32>
    %300 = arith.minimumf %299, %298 : vector<1x1xf32>
    %301 = arith.mulf %294, %300 : vector<1x1xf32>
    %cst_134 = arith.constant 0.166666672 : f32
    %302 = vector.broadcast %cst_134 : f32 to vector<1x1xf32>
    %303 = arith.mulf %301, %302 : vector<1x1xf32>
    %cst_135 = arith.constant 0.000000e+00 : f32
    %cst_136 = arith.constant 6.000000e+00 : f32
    %304 = vector.broadcast %cst_135 : f32 to vector<1x1xf32>
    %305 = arith.maximumf %304, %303 : vector<1x1xf32>
    %306 = vector.broadcast %cst_136 : f32 to vector<1x1xf32>
    %307 = arith.minimumf %306, %305 : vector<1x1xf32>
    %c1_137 = arith.constant 1 : index
    %308 = memref.load %arg4[%c1_137] : memref<3xf32, #tpu.memory_space<smem>>
    %309 = vector.broadcast %308 : f32 to vector<1x1xf32>
    %c1_138 = arith.constant 1 : index
    %c0_139 = arith.constant 0 : index
    %310 = memref.load %arg3[%c1_138, %c0_139] : memref<3x3xf32, #tpu.memory_space<smem>>
    %311 = vector.broadcast %310 : f32 to vector<1x1xf32>
    %312 = arith.mulf %311, %101 : vector<1x1xf32>
    %313 = arith.addf %309, %312 : vector<1x1xf32>
    %c1_140 = arith.constant 1 : index
    %c1_141 = arith.constant 1 : index
    %314 = memref.load %arg3[%c1_140, %c1_141] : memref<3x3xf32, #tpu.memory_space<smem>>
    %315 = vector.broadcast %314 : f32 to vector<1x1xf32>
    %316 = arith.mulf %315, %116 : vector<1x1xf32>
    %317 = arith.addf %313, %316 : vector<1x1xf32>
    %c1_142 = arith.constant 1 : index
    %c2_143 = arith.constant 2 : index
    %318 = memref.load %arg3[%c1_142, %c2_143] : memref<3x3xf32, #tpu.memory_space<smem>>
    %319 = vector.broadcast %318 : f32 to vector<1x1xf32>
    %320 = arith.mulf %319, %131 : vector<1x1xf32>
    %321 = arith.addf %317, %320 : vector<1x1xf32>
    %cst_144 = arith.constant 3.000000e+00 : f32
    %322 = vector.broadcast %cst_144 : f32 to vector<1x1xf32>
    %323 = arith.addf %321, %322 : vector<1x1xf32>
    %cst_145 = arith.constant 0.000000e+00 : f32
    %cst_146 = arith.constant 6.000000e+00 : f32
    %324 = vector.broadcast %cst_145 : f32 to vector<1x1xf32>
    %325 = arith.maximumf %324, %323 : vector<1x1xf32>
    %326 = vector.broadcast %cst_146 : f32 to vector<1x1xf32>
    %327 = arith.minimumf %326, %325 : vector<1x1xf32>
    %328 = arith.mulf %321, %327 : vector<1x1xf32>
    %cst_147 = arith.constant 0.166666672 : f32
    %329 = vector.broadcast %cst_147 : f32 to vector<1x1xf32>
    %330 = arith.mulf %328, %329 : vector<1x1xf32>
    %cst_148 = arith.constant 0.000000e+00 : f32
    %cst_149 = arith.constant 6.000000e+00 : f32
    %331 = vector.broadcast %cst_148 : f32 to vector<1x1xf32>
    %332 = arith.maximumf %331, %330 : vector<1x1xf32>
    %333 = vector.broadcast %cst_149 : f32 to vector<1x1xf32>
    %334 = arith.minimumf %333, %332 : vector<1x1xf32>
    %335 = arith.mulf %292, %292 : vector<16x128xf32>
    %336 = tpu.concatenate %292, %335 in 0 : vector<16x128xf32>, vector<16x128xf32> -> vector<32x128xf32>
    %cst_150 = arith.constant dense<0.000000e+00> : vector<32xf32>
    %337 = vector.multi_reduction <add>, %336, %cst_150 [1] : vector<32x128xf32> to vector<32xf32>
    %338 = vector.shape_cast %337 : vector<32xf32> to vector<32x1xf32>
    %339 = vector.extract_strided_slice %338 {offsets = [0, 0], sizes = [16, 1], strides = [1, 1]} : vector<32x1xf32> to vector<16x1xf32>
    %340 = vector.shape_cast %339 : vector<16x1xf32> to vector<1x16x1xf32>
    %cst_151 = arith.constant dense<0.000000e+00> : vector<1xf32>
    %341 = vector.multi_reduction <add>, %340, %cst_151 [1, 2] : vector<1x16x1xf32> to vector<1xf32>
    %342 = vector.shape_cast %341 : vector<1xf32> to vector<1x1x1xf32>
    %343 = vector.extract %342[0, 0, 0] : f32 from vector<1x1x1xf32>
    %344 = vector.broadcast %343 : f32 to vector<1x1xf32>
    %cst_152 = arith.constant 2.800000e+02 : f32
    %345 = vector.broadcast %cst_152 : f32 to vector<1x1xf32>
    %346 = arith.mulf %345, %307 : vector<1x1xf32>
    %347 = arith.addf %344, %346 : vector<1x1xf32>
    %cst_153 = arith.constant 2.640000e+02 : f32
    %348 = vector.broadcast %cst_153 : f32 to vector<1x1xf32>
    %349 = arith.mulf %348, %334 : vector<1x1xf32>
    %350 = arith.addf %347, %349 : vector<1x1xf32>
    %351 = vector.extract_strided_slice %338 {offsets = [16, 0], sizes = [16, 1], strides = [1, 1]} : vector<32x1xf32> to vector<16x1xf32>
    %352 = vector.shape_cast %351 : vector<16x1xf32> to vector<1x16x1xf32>
    %cst_154 = arith.constant dense<0.000000e+00> : vector<1xf32>
    %353 = vector.multi_reduction <add>, %352, %cst_154 [1, 2] : vector<1x16x1xf32> to vector<1xf32>
    %354 = vector.shape_cast %353 : vector<1xf32> to vector<1x1x1xf32>
    %355 = vector.extract %354[0, 0, 0] : f32 from vector<1x1x1xf32>
    %356 = vector.broadcast %355 : f32 to vector<1x1xf32>
    %cst_155 = arith.constant 2.800000e+02 : f32
    %357 = vector.broadcast %cst_155 : f32 to vector<1x1xf32>
    %358 = arith.mulf %357, %307 : vector<1x1xf32>
    %359 = arith.mulf %358, %307 : vector<1x1xf32>
    %360 = arith.addf %356, %359 : vector<1x1xf32>
    %cst_156 = arith.constant 2.640000e+02 : f32
    %361 = vector.broadcast %cst_156 : f32 to vector<1x1xf32>
    %362 = arith.mulf %361, %334 : vector<1x1xf32>
    %363 = arith.mulf %362, %334 : vector<1x1xf32>
    %364 = arith.addf %360, %363 : vector<1x1xf32>
    %cst_157 = arith.constant 3.85802472E-4 : f32
    %365 = vector.broadcast %cst_157 : f32 to vector<1x1xf32>
    %366 = arith.mulf %350, %365 : vector<1x1xf32>
    %cst_158 = arith.constant 3.85802472E-4 : f32
    %367 = vector.broadcast %cst_158 : f32 to vector<1x1xf32>
    %368 = arith.mulf %364, %367 : vector<1x1xf32>
    %369 = arith.mulf %366, %366 : vector<1x1xf32>
    %370 = arith.subf %368, %369 : vector<1x1xf32>
    %cst_159 = arith.constant 0.000000e+00 : f32
    %371 = vector.broadcast %cst_159 : f32 to vector<1x1xf32>
    %372 = arith.maximumf %370, %371 : vector<1x1xf32>
    %c1_160 = arith.constant 1 : index
    %373 = memref.load %arg5[%c1_160] : memref<3xf32, #tpu.memory_space<smem>>
    %cst_161 = arith.constant 9.99999974E-6 : f32
    %374 = vector.broadcast %cst_161 : f32 to vector<1x1xf32>
    %375 = arith.addf %372, %374 : vector<1x1xf32>
    %376 = math.rsqrt %375 : vector<1x1xf32>
    %377 = vector.broadcast %373 : f32 to vector<1x1xf32>
    %378 = arith.mulf %377, %376 : vector<1x1xf32>
    %c1_162 = arith.constant 1 : index
    %379 = memref.load %arg6[%c1_162] : memref<3xf32, #tpu.memory_space<smem>>
    %380 = arith.mulf %366, %378 : vector<1x1xf32>
    %381 = vector.broadcast %379 : f32 to vector<1x1xf32>
    %382 = arith.subf %381, %380 : vector<1x1xf32>
    %383 = vector.broadcast %378 : vector<1x1xf32> to vector<16x128xf32>
    %384 = arith.mulf %292, %383 : vector<16x128xf32>
    %385 = vector.broadcast %382 : vector<1x1xf32> to vector<16x128xf32>
    %386 = arith.addf %384, %385 : vector<16x128xf32>
    %c1_163 = arith.constant 1 : index
    %c0_164 = arith.constant 0 : index
    %c0_165 = arith.constant 0 : index
    %387 = vector.load %arg7[%c1_163, %c0_164, %c0_165] : memref<3x16x128xf32, #tpu.memory_space<vmem>>, vector<1x16x128xf32>
    %388 = vector.shape_cast %387 : vector<1x16x128xf32> to vector<16x128xf32>
    %389 = vector.shape_cast %386 : vector<16x128xf32> to vector<1x16x128xf32>
    tpu.vector_store %arg7[%c1_163, %c0_164, %c0_165], %389 {strides = array<i32>} : memref<3x16x128xf32, #tpu.memory_space<vmem>>, vector<1x16x128xf32>,
    %390 = arith.mulf %307, %378 : vector<1x1xf32>
    %391 = arith.addf %390, %382 : vector<1x1xf32>
    %392 = vector.shape_cast %391 : vector<1x1xf32> to vector<1x1xf32>
    %393 = vector.broadcast %392 : vector<1x1xf32> to vector<1x128xf32>
    %c1_166 = arith.constant 1 : index
    %c0_167 = arith.constant 0 : index
    %394 = vector.load %arg8[%c1_166, %c0_167] : memref<6x128xf32, #tpu.memory_space<vmem>>, vector<1x128xf32>
    tpu.vector_store %arg8[%c1_166, %c0_167], %393 {strides = array<i32>} : memref<6x128xf32, #tpu.memory_space<vmem>>, vector<1x128xf32>,
    %395 = arith.mulf %334, %378 : vector<1x1xf32>
    %396 = arith.addf %395, %382 : vector<1x1xf32>
    %397 = vector.shape_cast %396 : vector<1x1xf32> to vector<1x1xf32>
    %398 = vector.broadcast %397 : vector<1x1xf32> to vector<1x128xf32>
    %c4 = arith.constant 4 : index
    %c0_168 = arith.constant 0 : index
    %399 = vector.load %arg8[%c4, %c0_168] : memref<6x128xf32, #tpu.memory_space<vmem>>, vector<1x128xf32>
    tpu.vector_store %arg8[%c4, %c0_168], %398 {strides = array<i32>} : memref<6x128xf32, #tpu.memory_space<vmem>>, vector<1x128xf32>,
    %c2_169 = arith.constant 2 : index
    %c0_170 = arith.constant 0 : index
    %400 = memref.load %arg3[%c2_169, %c0_170] : memref<3x3xf32, #tpu.memory_space<smem>>
    %401 = vector.broadcast %400 : f32 to vector<16x128xf32>
    %402 = arith.mulf %401, %32 : vector<16x128xf32>
    %c2_171 = arith.constant 2 : index
    %c1_172 = arith.constant 1 : index
    %403 = memref.load %arg3[%c2_171, %c1_172] : memref<3x3xf32, #tpu.memory_space<smem>>
    %404 = vector.broadcast %403 : f32 to vector<16x128xf32>
    %405 = arith.mulf %404, %59 : vector<16x128xf32>
    %406 = arith.addf %402, %405 : vector<16x128xf32>
    %c2_173 = arith.constant 2 : index
    %c2_174 = arith.constant 2 : index
    %407 = memref.load %arg3[%c2_173, %c2_174] : memref<3x3xf32, #tpu.memory_space<smem>>
    %408 = vector.broadcast %407 : f32 to vector<16x128xf32>
    %409 = arith.mulf %408, %86 : vector<16x128xf32>
    %410 = arith.addf %406, %409 : vector<16x128xf32>
    %c2_175 = arith.constant 2 : index
    %411 = memref.load %arg4[%c2_175] : memref<3xf32, #tpu.memory_space<smem>>
    %412 = vector.broadcast %411 : f32 to vector<16x128xf32>
    %413 = arith.addf %410, %412 : vector<16x128xf32>
    %cst_176 = arith.constant 3.000000e+00 : f32
    %414 = vector.broadcast %cst_176 : f32 to vector<16x128xf32>
    %415 = arith.addf %413, %414 : vector<16x128xf32>
    %cst_177 = arith.constant 0.000000e+00 : f32
    %cst_178 = arith.constant 6.000000e+00 : f32
    %416 = vector.broadcast %cst_177 : f32 to vector<16x128xf32>
    %417 = arith.maximumf %416, %415 : vector<16x128xf32>
    %418 = vector.broadcast %cst_178 : f32 to vector<16x128xf32>
    %419 = arith.minimumf %418, %417 : vector<16x128xf32>
    %420 = arith.mulf %413, %419 : vector<16x128xf32>
    %cst_179 = arith.constant 0.166666672 : f32
    %421 = vector.broadcast %cst_179 : f32 to vector<16x128xf32>
    %422 = arith.mulf %420, %421 : vector<16x128xf32>
    %cst_180 = arith.constant 0.000000e+00 : f32
    %cst_181 = arith.constant 6.000000e+00 : f32
    %423 = vector.broadcast %cst_180 : f32 to vector<16x128xf32>
    %424 = arith.maximumf %423, %422 : vector<16x128xf32>
    %425 = vector.broadcast %cst_181 : f32 to vector<16x128xf32>
    %426 = arith.minimumf %425, %424 : vector<16x128xf32>
    %c2_182 = arith.constant 2 : index
    %427 = memref.load %arg4[%c2_182] : memref<3xf32, #tpu.memory_space<smem>>
    %428 = vector.broadcast %427 : f32 to vector<1x1xf32>
    %cst_183 = arith.constant 3.000000e+00 : f32
    %429 = vector.broadcast %cst_183 : f32 to vector<1x1xf32>
    %430 = arith.addf %428, %429 : vector<1x1xf32>
    %cst_184 = arith.constant 0.000000e+00 : f32
    %cst_185 = arith.constant 6.000000e+00 : f32
    %431 = vector.broadcast %cst_184 : f32 to vector<1x1xf32>
    %432 = arith.maximumf %431, %430 : vector<1x1xf32>
    %433 = vector.broadcast %cst_185 : f32 to vector<1x1xf32>
    %434 = arith.minimumf %433, %432 : vector<1x1xf32>
    %435 = arith.mulf %428, %434 : vector<1x1xf32>
    %cst_186 = arith.constant 0.166666672 : f32
    %436 = vector.broadcast %cst_186 : f32 to vector<1x1xf32>
    %437 = arith.mulf %435, %436 : vector<1x1xf32>
    %cst_187 = arith.constant 0.000000e+00 : f32
    %cst_188 = arith.constant 6.000000e+00 : f32
    %438 = vector.broadcast %cst_187 : f32 to vector<1x1xf32>
    %439 = arith.maximumf %438, %437 : vector<1x1xf32>
    %440 = vector.broadcast %cst_188 : f32 to vector<1x1xf32>
    %441 = arith.minimumf %440, %439 : vector<1x1xf32>
    %c2_189 = arith.constant 2 : index
    %442 = memref.load %arg4[%c2_189] : memref<3xf32, #tpu.memory_space<smem>>
    %443 = vector.broadcast %442 : f32 to vector<1x1xf32>
    %c2_190 = arith.constant 2 : index
    %c0_191 = arith.constant 0 : index
    %444 = memref.load %arg3[%c2_190, %c0_191] : memref<3x3xf32, #tpu.memory_space<smem>>
    %445 = vector.broadcast %444 : f32 to vector<1x1xf32>
    %446 = arith.mulf %445, %101 : vector<1x1xf32>
    %447 = arith.addf %443, %446 : vector<1x1xf32>
    %c2_192 = arith.constant 2 : index
    %c1_193 = arith.constant 1 : index
    %448 = memref.load %arg3[%c2_192, %c1_193] : memref<3x3xf32, #tpu.memory_space<smem>>
    %449 = vector.broadcast %448 : f32 to vector<1x1xf32>
    %450 = arith.mulf %449, %116 : vector<1x1xf32>
    %451 = arith.addf %447, %450 : vector<1x1xf32>
    %c2_194 = arith.constant 2 : index
    %c2_195 = arith.constant 2 : index
    %452 = memref.load %arg3[%c2_194, %c2_195] : memref<3x3xf32, #tpu.memory_space<smem>>
    %453 = vector.broadcast %452 : f32 to vector<1x1xf32>
    %454 = arith.mulf %453, %131 : vector<1x1xf32>
    %455 = arith.addf %451, %454 : vector<1x1xf32>
    %cst_196 = arith.constant 3.000000e+00 : f32
    %456 = vector.broadcast %cst_196 : f32 to vector<1x1xf32>
    %457 = arith.addf %455, %456 : vector<1x1xf32>
    %cst_197 = arith.constant 0.000000e+00 : f32
    %cst_198 = arith.constant 6.000000e+00 : f32
    %458 = vector.broadcast %cst_197 : f32 to vector<1x1xf32>
    %459 = arith.maximumf %458, %457 : vector<1x1xf32>
    %460 = vector.broadcast %cst_198 : f32 to vector<1x1xf32>
    %461 = arith.minimumf %460, %459 : vector<1x1xf32>
    %462 = arith.mulf %455, %461 : vector<1x1xf32>
    %cst_199 = arith.constant 0.166666672 : f32
    %463 = vector.broadcast %cst_199 : f32 to vector<1x1xf32>
    %464 = arith.mulf %462, %463 : vector<1x1xf32>
    %cst_200 = arith.constant 0.000000e+00 : f32
    %cst_201 = arith.constant 6.000000e+00 : f32
    %465 = vector.broadcast %cst_200 : f32 to vector<1x1xf32>
    %466 = arith.maximumf %465, %464 : vector<1x1xf32>
    %467 = vector.broadcast %cst_201 : f32 to vector<1x1xf32>
    %468 = arith.minimumf %467, %466 : vector<1x1xf32>
    %469 = arith.mulf %426, %426 : vector<16x128xf32>
    %470 = tpu.concatenate %426, %469 in 0 : vector<16x128xf32>, vector<16x128xf32> -> vector<32x128xf32>
    %cst_202 = arith.constant dense<0.000000e+00> : vector<32xf32>
    %471 = vector.multi_reduction <add>, %470, %cst_202 [1] : vector<32x128xf32> to vector<32xf32>
    %472 = vector.shape_cast %471 : vector<32xf32> to vector<32x1xf32>
    %473 = vector.extract_strided_slice %472 {offsets = [0, 0], sizes = [16, 1], strides = [1, 1]} : vector<32x1xf32> to vector<16x1xf32>
    %474 = vector.shape_cast %473 : vector<16x1xf32> to vector<1x16x1xf32>
    %cst_203 = arith.constant dense<0.000000e+00> : vector<1xf32>
    %475 = vector.multi_reduction <add>, %474, %cst_203 [1, 2] : vector<1x16x1xf32> to vector<1xf32>
    %476 = vector.shape_cast %475 : vector<1xf32> to vector<1x1x1xf32>
    %477 = vector.extract %476[0, 0, 0] : f32 from vector<1x1x1xf32>
    %478 = vector.broadcast %477 : f32 to vector<1x1xf32>
    %cst_204 = arith.constant 2.800000e+02 : f32
    %479 = vector.broadcast %cst_204 : f32 to vector<1x1xf32>
    %480 = arith.mulf %479, %441 : vector<1x1xf32>
    %481 = arith.addf %478, %480 : vector<1x1xf32>
    %cst_205 = arith.constant 2.640000e+02 : f32
    %482 = vector.broadcast %cst_205 : f32 to vector<1x1xf32>
    %483 = arith.mulf %482, %468 : vector<1x1xf32>
    %484 = arith.addf %481, %483 : vector<1x1xf32>
    %485 = vector.extract_strided_slice %472 {offsets = [16, 0], sizes = [16, 1], strides = [1, 1]} : vector<32x1xf32> to vector<16x1xf32>
    %486 = vector.shape_cast %485 : vector<16x1xf32> to vector<1x16x1xf32>
    %cst_206 = arith.constant dense<0.000000e+00> : vector<1xf32>
    %487 = vector.multi_reduction <add>, %486, %cst_206 [1, 2] : vector<1x16x1xf32> to vector<1xf32>
    %488 = vector.shape_cast %487 : vector<1xf32> to vector<1x1x1xf32>
    %489 = vector.extract %488[0, 0, 0] : f32 from vector<1x1x1xf32>
    %490 = vector.broadcast %489 : f32 to vector<1x1xf32>
    %cst_207 = arith.constant 2.800000e+02 : f32
    %491 = vector.broadcast %cst_207 : f32 to vector<1x1xf32>
    %492 = arith.mulf %491, %441 : vector<1x1xf32>
    %493 = arith.mulf %492, %441 : vector<1x1xf32>
    %494 = arith.addf %490, %493 : vector<1x1xf32>
    %cst_208 = arith.constant 2.640000e+02 : f32
    %495 = vector.broadcast %cst_208 : f32 to vector<1x1xf32>
    %496 = arith.mulf %495, %468 : vector<1x1xf32>
    %497 = arith.mulf %496, %468 : vector<1x1xf32>
    %498 = arith.addf %494, %497 : vector<1x1xf32>
    %cst_209 = arith.constant 3.85802472E-4 : f32
    %499 = vector.broadcast %cst_209 : f32 to vector<1x1xf32>
    %500 = arith.mulf %484, %499 : vector<1x1xf32>
    %cst_210 = arith.constant 3.85802472E-4 : f32
    %501 = vector.broadcast %cst_210 : f32 to vector<1x1xf32>
    %502 = arith.mulf %498, %501 : vector<1x1xf32>
    %503 = arith.mulf %500, %500 : vector<1x1xf32>
    %504 = arith.subf %502, %503 : vector<1x1xf32>
    %cst_211 = arith.constant 0.000000e+00 : f32
    %505 = vector.broadcast %cst_211 : f32 to vector<1x1xf32>
    %506 = arith.maximumf %504, %505 : vector<1x1xf32>
    %c2_212 = arith.constant 2 : index
    %507 = memref.load %arg5[%c2_212] : memref<3xf32, #tpu.memory_space<smem>>
    %cst_213 = arith.constant 9.99999974E-6 : f32
    %508 = vector.broadcast %cst_213 : f32 to vector<1x1xf32>
    %509 = arith.addf %506, %508 : vector<1x1xf32>
    %510 = math.rsqrt %509 : vector<1x1xf32>
    %511 = vector.broadcast %507 : f32 to vector<1x1xf32>
    %512 = arith.mulf %511, %510 : vector<1x1xf32>
    %c2_214 = arith.constant 2 : index
    %513 = memref.load %arg6[%c2_214] : memref<3xf32, #tpu.memory_space<smem>>
    %514 = arith.mulf %500, %512 : vector<1x1xf32>
    %515 = vector.broadcast %513 : f32 to vector<1x1xf32>
    %516 = arith.subf %515, %514 : vector<1x1xf32>
    %517 = vector.broadcast %512 : vector<1x1xf32> to vector<16x128xf32>
    %518 = arith.mulf %426, %517 : vector<16x128xf32>
    %519 = vector.broadcast %516 : vector<1x1xf32> to vector<16x128xf32>
    %520 = arith.addf %518, %519 : vector<16x128xf32>
    %c2_215 = arith.constant 2 : index
    %c0_216 = arith.constant 0 : index
    %c0_217 = arith.constant 0 : index
    %521 = vector.load %arg7[%c2_215, %c0_216, %c0_217] : memref<3x16x128xf32, #tpu.memory_space<vmem>>, vector<1x16x128xf32>
    %522 = vector.shape_cast %521 : vector<1x16x128xf32> to vector<16x128xf32>
    %523 = vector.shape_cast %520 : vector<16x128xf32> to vector<1x16x128xf32>
    tpu.vector_store %arg7[%c2_215, %c0_216, %c0_217], %523 {strides = array<i32>} : memref<3x16x128xf32, #tpu.memory_space<vmem>>, vector<1x16x128xf32>,
    %524 = arith.mulf %441, %512 : vector<1x1xf32>
    %525 = arith.addf %524, %516 : vector<1x1xf32>
    %526 = vector.shape_cast %525 : vector<1x1xf32> to vector<1x1xf32>
    %527 = vector.broadcast %526 : vector<1x1xf32> to vector<1x128xf32>
    %c2_218 = arith.constant 2 : index
    %c0_219 = arith.constant 0 : index
    %528 = vector.load %arg8[%c2_218, %c0_219] : memref<6x128xf32, #tpu.memory_space<vmem>>, vector<1x128xf32>
    tpu.vector_store %arg8[%c2_218, %c0_219], %527 {strides = array<i32>} : memref<6x128xf32, #tpu.memory_space<vmem>>, vector<1x128xf32>,
    %529 = arith.mulf %468, %512 : vector<1x1xf32>
    %530 = arith.addf %529, %516 : vector<1x1xf32>
    %531 = vector.shape_cast %530 : vector<1x1xf32> to vector<1x1xf32>
    %532 = vector.broadcast %531 : vector<1x1xf32> to vector<1x128xf32>
    %c5 = arith.constant 5 : index
    %c0_220 = arith.constant 0 : index
    %533 = vector.load %arg8[%c5, %c0_220] : memref<6x128xf32, #tpu.memory_space<vmem>>, vector<1x128xf32>
    tpu.vector_store %arg8[%c5, %c0_220], %532 {strides = array<i32>} : memref<6x128xf32, #tpu.memory_space<vmem>>, vector<1x128xf32>,
    return
  }
}

</mosaic_0001>

<llo_original>
// kernel: model_forward.1
$region0: #{model_forward.1}
  #allocation0 [shape = 'u32[]', space=smem, size = 0x4, offset = 0x4, fixed_abs, tag = 'smem constant byte address 0x4 - core index']
  #allocation1 [shape = 'u32[144,128]{1,0:T(1,128)}', space=vmem, size = 0x12000, scoped, tag = 'internal scratch']
  %s0 = inlined_call_operand.vmem [shape: f32[3,16,128], index: 0, kind: input, shape index: {}]
  %s1 = inlined_call_operand.vmem [shape: f32[3,3], index: 1, kind: input, shape index: {}]
  %s2 = inlined_call_operand.vmem [shape: f32[3], index: 2, kind: input, shape index: {}]
  %s3 = inlined_call_operand.vmem [shape: f32[3,3], index: 3, kind: input, shape index: {}]
  %s4 = inlined_call_operand.vmem [shape: f32[3], index: 4, kind: input, shape index: {}]
  %s5 = inlined_call_operand.vmem [shape: f32[3], index: 5, kind: input, shape index: {}]
  %s6 = inlined_call_operand.vmem [shape: f32[3], index: 6, kind: input, shape index: {}]
  %s7 = inlined_call_operand.vmem [shape: f32[3,16,128], index: 7, kind: output, shape index: {0}]
  %s8 = inlined_call_operand.vmem [shape: f32[6,128], index: 8, kind: output, shape index: {1}]
  %9 = xla_tuple %s7, %s8
  %s10 = sld [smem:[#allocation0]]
  $region70: #{model_forward.1} parent=0
    _
  %s12 = ssub.s32 1, %s10
  %s13 = scalar_select 0, %s12, %s10
  $region1: #{model_forward.1} parent=0
    #allocation2 [shape = 'u8[2048]{0}', space=smem, size = 0x800, scoped, tag = 'input window, operand 1, single buffered']
    #allocation3 [shape = 's32[1]{0}', space=sflag, size = 0x4, scoped, tag = 'scoped memory for model_forward.1']
    #allocation4 [shape = 'u8[512]{0}', space=smem, size = 0x200, scoped, tag = 'input window, operand 2, single buffered']
    #allocation5 [shape = 's32[1]{0}', space=sflag, size = 0x4, scoped, tag = 'scoped memory for model_forward.1']
    #allocation6 [shape = 'u8[2048]{0}', space=smem, size = 0x800, scoped, tag = 'input window, operand 3, single buffered']
    #allocation7 [shape = 'u8[512]{0}', space=smem, size = 0x200, scoped, tag = 'input window, operand 4, single buffered']
    #allocation8 [shape = 's32[1]{0}', space=sflag, size = 0x4, scoped, tag = 'scoped memory for model_forward.1']
    #allocation9 [shape = 'u8[512]{0}', space=smem, size = 0x200, scoped, tag = 'input window, operand 5, single buffered']
    #allocation10 [shape = 'u8[512]{0}', space=smem, size = 0x200, scoped, tag = 'input window, operand 6, single buffered']
    #allocation11 [shape = 's32[1]{0}', space=sflag, size = 0x4, scoped, tag = 'scoped memory for model_forward.1']
    %14 = vsyncpa [#allocation3], 0
    %15 = vsyncpa [#allocation5], 0
    %16 = vsyncpa [#allocation8], 0
    %17 = vsyncpa [#allocation11], 0
    // Predicated region
    $region2: #{model_forward.1} parent=1 // pred_check
      _
    $region3: #{model_forward.1} parent=1 // pred_check_branch
      %19 = sbr.rel (0) target = $region5
    $region4: #{model_forward.1} parent=1 // pred_region
      _
    $region5: #{model_forward.1} parent=1 // pred_fallthru
      _
    // Predicated region
    $region6: #{model_forward.1} parent=1 // pred_check
      _
    $region7: #{model_forward.1} parent=1 // pred_check_branch
      %21 = sbr.rel (0) target = $region9
    $region8: #{model_forward.1} parent=1 // pred_region
      %s23 = ssub.s32 64, 64
      %24 = vsyncadd [#allocation3], %s23
      %s26 = sshll.u32 %s1, 4
      %s27 = int_to_ptr.vmem [resolvable:$true] %s26
      %29 = dma.vmem_to_smem %s27, 64, [#allocation2], [#allocation3]
    $region9: #{model_forward.1} parent=1 // pred_fallthru
      _
    // Predicated region
    $region10: #{model_forward.1} parent=1 // pred_check
      _
    $region11: #{model_forward.1} parent=1 // pred_check_branch
      %31 = sbr.rel (0) target = $region13
    $region12: #{model_forward.1} parent=1 // pred_region
      %s33 = ssub.s32 16, 16
      %34 = vsyncadd [#allocation5], %s33
      %s36 = sshll.u32 %s2, 4
      %s37 = int_to_ptr.vmem [resolvable:$true] %s36
      %39 = dma.vmem_to_smem %s37, 16, [#allocation4], [#allocation5]
    $region13: #{model_forward.1} parent=1 // pred_fallthru
      _
    // Predicated region
    $region14: #{model_forward.1} parent=1 // pred_check
      _
    $region15: #{model_forward.1} parent=1 // pred_check_branch
      %41 = sbr.rel (0) target = $region17
    $region16: #{model_forward.1} parent=1 // pred_region
      %s43 = ssub.s32 64, 64
      %44 = vsyncadd [#allocation5], %s43
      %s46 = sshll.u32 %s3, 4
      %s47 = int_to_ptr.vmem [resolvable:$true] %s46
      %49 = dma.vmem_to_smem %s47, 64, [#allocation6], [#allocation5]
    $region17: #{model_forward.1} parent=1 // pred_fallthru
      _
    // Predicated region
    $region18: #{model_forward.1} parent=1 // pred_check
      _
    $region19: #{model_forward.1} parent=1 // pred_check_branch
      %51 = sbr.rel (0) target = $region21
    $region20: #{model_forward.1} parent=1 // pred_region
      %s53 = ssub.s32 16, 16
      %54 = vsyncadd [#allocation8], %s53
      %s56 = sshll.u32 %s4, 4
      %s57 = int_to_ptr.vmem [resolvable:$true] %s56
      %59 = dma.vmem_to_smem %s57, 16, [#allocation7], [#allocation8]
    $region21: #{model_forward.1} parent=1 // pred_fallthru
      _
    // Predicated region
    $region22: #{model_forward.1} parent=1 // pred_check
      _
    $region23: #{model_forward.1} parent=1 // pred_check_branch
      %61 = sbr.rel (0) target = $region25
    $region24: #{model_forward.1} parent=1 // pred_region
      %s63 = ssub.s32 16, 16
      %64 = vsyncadd [#allocation8], %s63
      %s66 = sshll.u32 %s5, 4
      %s67 = int_to_ptr.vmem [resolvable:$true] %s66
      %69 = dma.vmem_to_smem %s67, 16, [#allocation9], [#allocation8]
    $region25: #{model_forward.1} parent=1 // pred_fallthru
      _
    // Predicated region
    $region26: #{model_forward.1} parent=1 // pred_check
      _
    $region27: #{model_forward.1} parent=1 // pred_check_branch
      %71 = sbr.rel (0) target = $region29
    $region28: #{model_forward.1} parent=1 // pred_region
      %s73 = ssub.s32 16, 16
      %74 = vsyncadd [#allocation11], %s73
      %s76 = sshll.u32 %s6, 4
      %s77 = int_to_ptr.vmem [resolvable:$true] %s76
      %79 = dma.vmem_to_smem %s77, 16, [#allocation10], [#allocation11]
    $region29: #{model_forward.1} parent=1 // pred_fallthru
      _
    // Predicated region
    $region30: #{model_forward.1} parent=1 // pred_check
      _
    $region31: #{model_forward.1} parent=1 // pred_check_branch
      %81 = sbr.rel (0) target = $region33
    $region32: #{model_forward.1} parent=1 // pred_region
      %82 = dma.done [#allocation3], 64
    $region33: #{model_forward.1} parent=1 // pred_fallthru
      _
    // Predicated region
    $region34: #{model_forward.1} parent=1 // pred_check
      _
    $region35: #{model_forward.1} parent=1 // pred_check_branch
      %84 = sbr.rel (0) target = $region37
    $region36: #{model_forward.1} parent=1 // pred_region
      %85 = dma.done [#allocation5], 16
    $region37: #{model_forward.1} parent=1 // pred_fallthru
      _
    // Predicated region
    $region38: #{model_forward.1} parent=1 // pred_check
      _
    $region39: #{model_forward.1} parent=1 // pred_check_branch
      %87 = sbr.rel (0) target = $region41
    $region40: #{model_forward.1} parent=1 // pred_region
      %88 = dma.done [#allocation5], 64
    $region41: #{model_forward.1} parent=1 // pred_fallthru
      _
    // Predicated region
    $region42: #{model_forward.1} parent=1 // pred_check
      _
    $region43: #{model_forward.1} parent=1 // pred_check_branch
      %90 = sbr.rel (0) target = $region45
    $region44: #{model_forward.1} parent=1 // pred_region
      %91 = dma.done [#allocation8], 16
    $region45: #{model_forward.1} parent=1 // pred_fallthru
      _
    // Predicated region
    $region46: #{model_forward.1} parent=1 // pred_check
      _
    $region47: #{model_forward.1} parent=1 // pred_check_branch
      %93 = sbr.rel (0) target = $region49
    $region48: #{model_forward.1} parent=1 // pred_region
      %94 = dma.done [#allocation8], 16
    $region49: #{model_forward.1} parent=1 // pred_fallthru
      _
    // Predicated region
    $region50: #{model_forward.1} parent=1 // pred_check
      _
    $region51: #{model_forward.1} parent=1 // pred_check_branch
      %96 = sbr.rel (0) target = $region53
    $region52: #{model_forward.1} parent=1 // pred_region
      %97 = dma.done [#allocation11], 16
    $region53: #{model_forward.1} parent=1 // pred_fallthru
      _
    %98 = sfence
    %v99 = vld [vmem:[%s0] sm:$0xff]
    %v100 = vld [vmem:[%s0 + $0x8] sm:$0xff]
    %s101 = scalar_lea.vmem %s0, 16
    %v102 = vld [vmem:[%s101] sm:$0xff]
    %v103 = vld [vmem:[%s101 + $0x8] sm:$0xff]
    %s104 = scalar_lea.vmem %s0, 32
    %v105 = vld [vmem:[%s104] sm:$0xff]
    %v106 = vld [vmem:[%s104 + $0x8] sm:$0xff]
    %s107 = sld [smem:[#allocation2]]
    %v108 = vstv %s107
    %v109 = vmul.f32 %v108, %v99
    %v110 = vmul.f32 %v108, %v100
    %s111 = sld [smem:[#allocation2 + $0x1]]
    %v112 = vstv %s111
    %v113 = vmul.f32 %v112, %v102
    %v114 = vmul.f32 %v112, %v103
    %v115 = vadd.f32 %v109, %v113
    %v116 = vadd.f32 %v110, %v114
    %s117 = sld [smem:[#allocation2 + $0x2]]
    %v118 = vstv %s117
    %v119 = vmul.f32 %v118, %v105
    %v120 = vmul.f32 %v118, %v106
    %v121 = vadd.f32 %v115, %v119
    %v122 = vadd.f32 %v116, %v120
    %s123 = sld [smem:[#allocation4]]
    %v124 = vstv %s123
    %v125 = vadd.f32 %v121, %v124
    %v126 = vadd.f32 %v122, %v124
    %v127 = vadd.f32 %v125, 3.0
    %v128 = vadd.f32 %v126, 3.0
    %v129 = vmax.f32 %v127, 0.0
    %v130 = vmax.f32 %v128, 0.0
    %v131 = vmin.f32 %v129, 6.0
    %v132 = vmin.f32 %v130, 6.0
    %v133 = vmul.f32 %v125, %v131
    %v134 = vmul.f32 %v126, %v132
    %v135 = vmul.f32 %v133, 0.16666667
    %v136 = vmul.f32 %v134, 0.16666667
    %v137 = vmax.f32 %v135, 0.0
    %v138 = vmax.f32 %v136, 0.0
    %v139 = vmin.f32 %v137, 6.0
    %v140 = vmin.f32 %v138, 6.0
    %s141 = sld [smem:[#allocation2 + $0x80]]
    %v142 = vstv %s141
    %v143 = vmul.f32 %v142, %v99
    %v144 = vmul.f32 %v142, %v100
    %s145 = sld [smem:[#allocation2 + $0x81]]
    %v146 = vstv %s145
    %v147 = vmul.f32 %v146, %v102
    %v148 = vmul.f32 %v146, %v103
    %v149 = vadd.f32 %v143, %v147
    %v150 = vadd.f32 %v144, %v148
    %s151 = sld [smem:[#allocation2 + $0x82]]
    %v152 = vstv %s151
    %v153 = vmul.f32 %v152, %v105
    %v154 = vmul.f32 %v152, %v106
    %v155 = vadd.f32 %v149, %v153
    %v156 = vadd.f32 %v150, %v154
    %s157 = sld [smem:[#allocation4 + $0x1]]
    %v158 = vstv %s157
    %v159 = vadd.f32 %v155, %v158
    %v160 = vadd.f32 %v156, %v158
    %v161 = vadd.f32 %v159, 3.0
    %v162 = vadd.f32 %v160, 3.0
    %v163 = vmax.f32 %v161, 0.0
    %v164 = vmax.f32 %v162, 0.0
    %v165 = vmin.f32 %v163, 6.0
    %v166 = vmin.f32 %v164, 6.0
    %v167 = vmul.f32 %v159, %v165
    %v168 = vmul.f32 %v160, %v166
    %v169 = vmul.f32 %v167, 0.16666667
    %v170 = vmul.f32 %v168, 0.16666667
    %v171 = vmax.f32 %v169, 0.0
    %v172 = vmax.f32 %v170, 0.0
    %v173 = vmin.f32 %v171, 6.0
    %v174 = vmin.f32 %v172, 6.0
    %s175 = sld [smem:[#allocation2 + $0x100]]
    %v176 = vstv %s175
    %v177 = vmul.f32 %v176, %v99
    %v178 = vmul.f32 %v176, %v100
    %s179 = sld [smem:[#allocation2 + $0x101]]
    %v180 = vstv %s179
    %v181 = vmul.f32 %v180, %v102
    %v182 = vmul.f32 %v180, %v103
    %v183 = vadd.f32 %v177, %v181
    %v184 = vadd.f32 %v178, %v182
    %s185 = sld [smem:[#allocation2 + $0x102]]
    %v186 = vstv %s185
    %v187 = vmul.f32 %v186, %v105
    %v188 = vmul.f32 %v186, %v106
    %v189 = vadd.f32 %v183, %v187
    %v190 = vadd.f32 %v184, %v188
    %s191 = sld [smem:[#allocation4 + $0x2]]
    %v192 = vstv %s191
    %v193 = vadd.f32 %v189, %v192
    %v194 = vadd.f32 %v190, %v192
    %v195 = vadd.f32 %v193, 3.0
    %v196 = vadd.f32 %v194, 3.0
    %v197 = vmax.f32 %v195, 0.0
    %v198 = vmax.f32 %v196, 0.0
    %v199 = vmin.f32 %v197, 6.0
    %v200 = vmin.f32 %v198, 6.0
    %v201 = vmul.f32 %v193, %v199
    %v202 = vmul.f32 %v194, %v200
    %v203 = vmul.f32 %v201, 0.16666667
    %v204 = vmul.f32 %v202, 0.16666667
    %v205 = vmax.f32 %v203, 0.0
    %v206 = vmax.f32 %v204, 0.0
    %v207 = vmin.f32 %v205, 6.0
    %v208 = vmin.f32 %v206, 6.0
    %v209 = vadd.f32 %v124, 3.0
    %v210 = vmax.f32 %v209, 0.0
    %v211 = vmin.f32 %v210, 6.0
    %v212 = vmul.f32 %v124, %v211
    %v213 = vmul.f32 %v212, 0.16666667
    %v214 = vmax.f32 %v213, 0.0
    %v215 = vmin.f32 %v214, 6.0
    %v216 = vadd.f32 %v158, 3.0
    %v217 = vmax.f32 %v216, 0.0
    %v218 = vmin.f32 %v217, 6.0
    %v219 = vmul.f32 %v158, %v218
    %v220 = vmul.f32 %v219, 0.16666667
    %v221 = vmax.f32 %v220, 0.0
    %v222 = vmin.f32 %v221, 6.0
    %v223 = vadd.f32 %v192, 3.0
    %v224 = vmax.f32 %v223, 0.0
    %v225 = vmin.f32 %v224, 6.0
    %v226 = vmul.f32 %v192, %v225
    %v227 = vmul.f32 %v226, 0.16666667
    %v228 = vmax.f32 %v227, 0.0
    %v229 = vmin.f32 %v228, 6.0
    %s230 = sld [smem:[#allocation6]]
    %v231 = vstv %s230
    %v232 = vmul.f32 %v231, %v139
    %v233 = vmul.f32 %v231, %v140
    %s234 = sld [smem:[#allocation6 + $0x1]]
    %v235 = vstv %s234
    %v236 = vmul.f32 %v235, %v173
    %v237 = vmul.f32 %v235, %v174
    %v238 = vadd.f32 %v232, %v236
    %v239 = vadd.f32 %v233, %v237
    %s240 = sld [smem:[#allocation6 + $0x2]]
    %v241 = vstv %s240
    %v242 = vmul.f32 %v241, %v207
    %v243 = vmul.f32 %v241, %v208
    %v244 = vadd.f32 %v238, %v242
    %v245 = vadd.f32 %v239, %v243
    %s246 = sld [smem:[#allocation7]]
    %v247 = vstv %s246
    %v248 = vadd.f32 %v244, %v247
    %v249 = vadd.f32 %v245, %v247
    %v250 = vadd.f32 %v248, 3.0
    %v251 = vadd.f32 %v249, 3.0
    %v252 = vmax.f32 %v250, 0.0
    %v253 = vmax.f32 %v251, 0.0
    %v254 = vmin.f32 %v252, 6.0
    %v255 = vmin.f32 %v253, 6.0
    %v256 = vmul.f32 %v248, %v254
    %v257 = vmul.f32 %v249, %v255
    %v258 = vmul.f32 %v256, 0.16666667
    %v259 = vmul.f32 %v257, 0.16666667
    %v260 = vmax.f32 %v258, 0.0
    %v261 = vmax.f32 %v259, 0.0
    %v262 = vmin.f32 %v260, 6.0
    %v263 = vmin.f32 %v261, 6.0
    %v264 = vadd.f32 %v247, 3.0
    %v265 = vmax.f32 %v264, 0.0
    %v266 = vmin.f32 %v265, 6.0
    %v267 = vmul.f32 %v247, %v266
    %v268 = vmul.f32 %v267, 0.16666667
    %v269 = vmax.f32 %v268, 0.0
    %v270 = vmin.f32 %v269, 6.0
    %v271 = vmul.f32 %v231, %v215
    %v272 = vadd.f32 %v247, %v271
    %v273 = vmul.f32 %v235, %v222
    %v274 = vadd.f32 %v272, %v273
    %v275 = vmul.f32 %v241, %v229
    %v276 = vadd.f32 %v274, %v275
    %v277 = vadd.f32 %v276, 3.0
    %v278 = vmax.f32 %v277, 0.0
    %v279 = vmin.f32 %v278, 6.0
    %v280 = vmul.f32 %v276, %v279
    %v281 = vmul.f32 %v280, 0.16666667
    %v282 = vmax.f32 %v281, 0.0
    %v283 = vmin.f32 %v282, 6.0
    %v284 = vmul.f32 %v262, %v262
    %v285 = vmul.f32 %v263, %v263
    %286 = vadd.xlane.f32.xlu0 %v262
    %v287 = vpop.xlane.xlu0 %286
    %288 = vadd.xlane.f32.xlu0 %v263
    %v289 = vpop.xlane.xlu0 %288
    %290 = vadd.xlane.f32.xlu0 %v284
    %v291 = vpop.xlane.xlu0 %290
    %292 = vadd.xlane.f32.xlu0 %v285
    %v293 = vpop.xlane.xlu0 %292
    %vm294 = vcmask 7168
    %v295 = vsel %vm294, %v287, 0.0
    %v296 = vsel %vm294, %v289, 0.0
    %v297 = vadd.f32 %v295, %v296
    %298 = vadd.xlane.f32.xlu0 %v297
    %v299 = vpop.xlane.xlu0 %298
    %v300 = vrot.slane %v299, 4
    %v301 = vadd.f32 %v299, %v300
    %v302 = vrot.slane %v301, 2
    %v303 = vadd.f32 %v301, %v302
    %v304 = vrot.slane %v303, 1
    %v305 = vadd.f32 %v303, %v304
    %s306 = vtos %v305
    %v307 = vstv %s306
    %v308 = vmul.f32 %v270, 280.0
    %v309 = vadd.f32 %v307, %v308
    %v310 = vmul.f32 %v283, 264.0
    %v311 = vadd.f32 %v309, %v310
    %v312 = vsel %vm294, %v291, 0.0
    %v313 = vsel %vm294, %v293, 0.0
    %v314 = vadd.f32 %v312, %v313
    %315 = vadd.xlane.f32.xlu0 %v314
    %v316 = vpop.xlane.xlu0 %315
    %v317 = vrot.slane %v316, 4
    %v318 = vadd.f32 %v316, %v317
    %v319 = vrot.slane %v318, 2
    %v320 = vadd.f32 %v318, %v319
    %v321 = vrot.slane %v320, 1
    %v322 = vadd.f32 %v320, %v321
    %s323 = vtos %v322
    %v324 = vstv %s323
    %v325 = vmul.f32 %v308, %v270
    %v326 = vadd.f32 %v324, %v325
    %v327 = vmul.f32 %v310, %v283
    %v328 = vadd.f32 %v326, %v327
    %v329 = vmul.f32 %v311, 0.00038580247
    %v330 = vmul.f32 %v328, 0.00038580247
    %v331 = vmul.f32 %v329, %v329
    %v332 = vsub.f32 %v330, %v331
    %v333 = vmax.f32 %v332, 0.0
    %s334 = sld [smem:[#allocation9]]
    %v335 = vadd.f32 %v333, 1e-05
    %v336 = vrsqrt.pop %v335
    %v337 = vstv %s334
    %v338 = vmul.f32 %v337, %v336
    %s339 = sld [smem:[#allocation10]]
    %v340 = vmul.f32 %v329, %v338
    %v341 = vstv %s339
    %v342 = vsub.f32 %v341, %v340
    %v343 = vmul.f32 %v262, %v338
    %v344 = vmul.f32 %v263, %v338
    %v345 = vadd.f32 %v343, %v342
    %v346 = vadd.f32 %v344, %v342
    %347 = vst [vmem:[%s7] sm:$0xff] %v345
    %348 = vst [vmem:[%s7 + $0x8] sm:$0xff] %v346
    %v349 = vmul.f32 %v270, %v338
    %v350 = vadd.f32 %v349, %v342
    %351 = vst [vmem:[%s8] sm:$0x1] %v350
    %v352 = vmul.f32 %v283, %v338
    %v353 = vadd.f32 %v352, %v342
    %354 = vst [vmem:[%s8 + $0x3] sm:$0x1] %v353
    %s355 = sld [smem:[#allocation6 + $0x80]]
    %v356 = vstv %s355
    %v357 = vmul.f32 %v356, %v139
    %v358 = vmul.f32 %v356, %v140
    %s359 = sld [smem:[#allocation6 + $0x81]]
    %v360 = vstv %s359
    %v361 = vmul.f32 %v360, %v173
    %v362 = vmul.f32 %v360, %v174
    %v363 = vadd.f32 %v357, %v361
    %v364 = vadd.f32 %v358, %v362
    %s365 = sld [smem:[#allocation6 + $0x82]]
    %v366 = vstv %s365
    %v367 = vmul.f32 %v366, %v207
    %v368 = vmul.f32 %v366, %v208
    %v369 = vadd.f32 %v363, %v367
    %v370 = vadd.f32 %v364, %v368
    %s371 = sld [smem:[#allocation7 + $0x1]]
    %v372 = vstv %s371
    %v373 = vadd.f32 %v369, %v372
    %v374 = vadd.f32 %v370, %v372
    %v375 = vadd.f32 %v373, 3.0
    %v376 = vadd.f32 %v374, 3.0
    %v377 = vmax.f32 %v375, 0.0
    %v378 = vmax.f32 %v376, 0.0
    %v379 = vmin.f32 %v377, 6.0
    %v380 = vmin.f32 %v378, 6.0
    %v381 = vmul.f32 %v373, %v379
    %v382 = vmul.f32 %v374, %v380
    %v383 = vmul.f32 %v381, 0.16666667
    %v384 = vmul.f32 %v382, 0.16666667
    %v385 = vmax.f32 %v383, 0.0
    %v386 = vmax.f32 %v384, 0.0
    %v387 = vmin.f32 %v385, 6.0
    %v388 = vmin.f32 %v386, 6.0
    %v389 = vadd.f32 %v372, 3.0
    %v390 = vmax.f32 %v389, 0.0
    %v391 = vmin.f32 %v390, 6.0
    %v392 = vmul.f32 %v372, %v391
    %v393 = vmul.f32 %v392, 0.16666667
    %v394 = vmax.f32 %v393, 0.0
    %v395 = vmin.f32 %v394, 6.0
    %v396 = vmul.f32 %v356, %v215
    %v397 = vadd.f32 %v372, %v396
    %v398 = vmul.f32 %v360, %v222
    %v399 = vadd.f32 %v397, %v398
    %v400 = vmul.f32 %v366, %v229
    %v401 = vadd.f32 %v399, %v400
    %v402 = vadd.f32 %v401, 3.0
    %v403 = vmax.f32 %v402, 0.0
    %v404 = vmin.f32 %v403, 6.0
    %v405 = vmul.f32 %v401, %v404
    %v406 = vmul.f32 %v405, 0.16666667
    %v407 = vmax.f32 %v406, 0.0
    %v408 = vmin.f32 %v407, 6.0
    %v409 = vmul.f32 %v387, %v387
    %v410 = vmul.f32 %v388, %v388
    %411 = vadd.xlane.f32.xlu0 %v387
    %v412 = vpop.xlane.xlu0 %411
    %413 = vadd.xlane.f32.xlu0 %v388
    %v414 = vpop.xlane.xlu0 %413
    %415 = vadd.xlane.f32.xlu0 %v409
    %v416 = vpop.xlane.xlu0 %415
    %417 = vadd.xlane.f32.xlu0 %v410
    %v418 = vpop.xlane.xlu0 %417
    %v419 = vsel %vm294, %v412, 0.0
    %v420 = vsel %vm294, %v414, 0.0
    %v421 = vadd.f32 %v419, %v420
    %422 = vadd.xlane.f32.xlu0 %v421
    %v423 = vpop.xlane.xlu0 %422
    %v424 = vrot.slane %v423, 4
    %v425 = vadd.f32 %v423, %v424
    %v426 = vrot.slane %v425, 2
    %v427 = vadd.f32 %v425, %v426
    %v428 = vrot.slane %v427, 1
    %v429 = vadd.f32 %v427, %v428
    %s430 = vtos %v429
    %v431 = vstv %s430
    %v432 = vmul.f32 %v395, 280.0
    %v433 = vadd.f32 %v431, %v432
    %v434 = vmul.f32 %v408, 264.0
    %v435 = vadd.f32 %v433, %v434
    %v436 = vsel %vm294, %v416, 0.0
    %v437 = vsel %vm294, %v418, 0.0
    %v438 = vadd.f32 %v436, %v437
    %439 = vadd.xlane.f32.xlu0 %v438
    %v440 = vpop.xlane.xlu0 %439
    %v441 = vrot.slane %v440, 4
    %v442 = vadd.f32 %v440, %v441
    %v443 = vrot.slane %v442, 2
    %v444 = vadd.f32 %v442, %v443
    %v445 = vrot.slane %v444, 1
    %v446 = vadd.f32 %v444, %v445
    %s447 = vtos %v446
    %v448 = vstv %s447
    %v449 = vmul.f32 %v432, %v395
    %v450 = vadd.f32 %v448, %v449
    %v451 = vmul.f32 %v434, %v408
    %v452 = vadd.f32 %v450, %v451
    %v453 = vmul.f32 %v435, 0.00038580247
    %v454 = vmul.f32 %v452, 0.00038580247
    %v455 = vmul.f32 %v453, %v453
    %v456 = vsub.f32 %v454, %v455
    %v457 = vmax.f32 %v456, 0.0
    %s458 = sld [smem:[#allocation9 + $0x1]]
    %v459 = vadd.f32 %v457, 1e-05
    %v460 = vrsqrt.pop %v459
    %v461 = vstv %s458
    %v462 = vmul.f32 %v461, %v460
    %s463 = sld [smem:[#allocation10 + $0x1]]
    %v464 = vmul.f32 %v453, %v462
    %v465 = vstv %s463
    %v466 = vsub.f32 %v465, %v464
    %v467 = vmul.f32 %v387, %v462
    %v468 = vmul.f32 %v388, %v462
    %v469 = vadd.f32 %v467, %v466
    %v470 = vadd.f32 %v468, %v466
    %s471 = scalar_lea.vmem %s7, 16
    %472 = vst [vmem:[%s471] sm:$0xff] %v469
    %473 = vst [vmem:[%s471 + $0x8] sm:$0xff] %v470
    %v474 = vmul.f32 %v395, %v462
    %v475 = vadd.f32 %v474, %v466
    %476 = vst [vmem:[%s8 + $0x1] sm:$0x1] %v475
    %v477 = vmul.f32 %v408, %v462
    %v478 = vadd.f32 %v477, %v466
    %479 = vst [vmem:[%s8 + $0x4] sm:$0x1] %v478
    %s480 = sld [smem:[#allocation6 + $0x100]]
    %v481 = vstv %s480
    %v482 = vmul.f32 %v481, %v139
    %v483 = vmul.f32 %v481, %v140
    %s484 = sld [smem:[#allocation6 + $0x101]]
    %v485 = vstv %s484
    %v486 = vmul.f32 %v485, %v173
    %v487 = vmul.f32 %v485, %v174
    %v488 = vadd.f32 %v482, %v486
    %v489 = vadd.f32 %v483, %v487
    %s490 = sld [smem:[#allocation6 + $0x102]]
    %v491 = vstv %s490
    %v492 = vmul.f32 %v491, %v207
    %v493 = vmul.f32 %v491, %v208
    %v494 = vadd.f32 %v488, %v492
    %v495 = vadd.f32 %v489, %v493
    %s496 = sld [smem:[#allocation7 + $0x2]]
    %v497 = vstv %s496
    %v498 = vadd.f32 %v494, %v497
    %v499 = vadd.f32 %v495, %v497
    %v500 = vadd.f32 %v498, 3.0
    %v501 = vadd.f32 %v499, 3.0
    %v502 = vmax.f32 %v500, 0.0
    %v503 = vmax.f32 %v501, 0.0
    %v504 = vmin.f32 %v502, 6.0
    %v505 = vmin.f32 %v503, 6.0
    %v506 = vmul.f32 %v498, %v504
    %v507 = vmul.f32 %v499, %v505
    %v508 = vmul.f32 %v506, 0.16666667
    %v509 = vmul.f32 %v507, 0.16666667
    %v510 = vmax.f32 %v508, 0.0
    %v511 = vmax.f32 %v509, 0.0
    %v512 = vmin.f32 %v510, 6.0
    %v513 = vmin.f32 %v511, 6.0
    %v514 = vadd.f32 %v497, 3.0
    %v515 = vmax.f32 %v514, 0.0
    %v516 = vmin.f32 %v515, 6.0
    %v517 = vmul.f32 %v497, %v516
    %v518 = vmul.f32 %v517, 0.16666667
    %v519 = vmax.f32 %v518, 0.0
    %v520 = vmin.f32 %v519, 6.0
    %v521 = vmul.f32 %v481, %v215
    %v522 = vadd.f32 %v497, %v521
    %v523 = vmul.f32 %v485, %v222
    %v524 = vadd.f32 %v522, %v523
    %v525 = vmul.f32 %v491, %v229
    %v526 = vadd.f32 %v524, %v525
    %v527 = vadd.f32 %v526, 3.0
    %v528 = vmax.f32 %v527, 0.0
    %v529 = vmin.f32 %v528, 6.0
    %v530 = vmul.f32 %v526, %v529
    %v531 = vmul.f32 %v530, 0.16666667
    %v532 = vmax.f32 %v531, 0.0
    %v533 = vmin.f32 %v532, 6.0
    %v534 = vmul.f32 %v512, %v512
    %v535 = vmul.f32 %v513, %v513
    %536 = vadd.xlane.f32.xlu0 %v512
    %v537 = vpop.xlane.xlu0 %536
    %538 = vadd.xlane.f32.xlu0 %v513
    %v539 = vpop.xlane.xlu0 %538
    %540 = vadd.xlane.f32.xlu0 %v534
    %v541 = vpop.xlane.xlu0 %540
    %542 = vadd.xlane.f32.xlu0 %v535
    %v543 = vpop.xlane.xlu0 %542
    %v544 = vsel %vm294, %v537, 0.0
    %v545 = vsel %vm294, %v539, 0.0
    %v546 = vadd.f32 %v544, %v545
    %547 = vadd.xlane.f32.xlu0 %v546
    %v548 = vpop.xlane.xlu0 %547
    %v549 = vrot.slane %v548, 4
    %v550 = vadd.f32 %v548, %v549
    %v551 = vrot.slane %v550, 2
    %v552 = vadd.f32 %v550, %v551
    %v553 = vrot.slane %v552, 1
    %v554 = vadd.f32 %v552, %v553
    %s555 = vtos %v554
    %v556 = vstv %s555
    %v557 = vmul.f32 %v520, 280.0
    %v558 = vadd.f32 %v556, %v557
    %v559 = vmul.f32 %v533, 264.0
    %v560 = vadd.f32 %v558, %v559
    %v561 = vsel %vm294, %v541, 0.0
    %v562 = vsel %vm294, %v543, 0.0
    %v563 = vadd.f32 %v561, %v562
    %564 = vadd.xlane.f32.xlu0 %v563
    %v565 = vpop.xlane.xlu0 %564
    %v566 = vrot.slane %v565, 4
    %v567 = vadd.f32 %v565, %v566
    %v568 = vrot.slane %v567, 2
    %v569 = vadd.f32 %v567, %v568
    %v570 = vrot.slane %v569, 1
    %v571 = vadd.f32 %v569, %v570
    %s572 = vtos %v571
    %v573 = vstv %s572
    %v574 = vmul.f32 %v557, %v520
    %v575 = vadd.f32 %v573, %v574
    %v576 = vmul.f32 %v559, %v533
    %v577 = vadd.f32 %v575, %v576
    %v578 = vmul.f32 %v560, 0.00038580247
    %v579 = vmul.f32 %v577, 0.00038580247
    %v580 = vmul.f32 %v578, %v578
    %v581 = vsub.f32 %v579, %v580
    %v582 = vmax.f32 %v581, 0.0
    %s583 = sld [smem:[#allocation9 + $0x2]]
    %v584 = vadd.f32 %v582, 1e-05
    %v585 = vrsqrt.pop %v584
    %v586 = vstv %s583
    %v587 = vmul.f32 %v586, %v585
    %s588 = sld [smem:[#allocation10 + $0x2]]
    %v589 = vmul.f32 %v578, %v587
    %v590 = vstv %s588
    %v591 = vsub.f32 %v590, %v589
    %v592 = vmul.f32 %v512, %v587
    %v593 = vmul.f32 %v513, %v587
    %v594 = vadd.f32 %v592, %v591
    %v595 = vadd.f32 %v593, %v591
    %s596 = scalar_lea.vmem %s7, 32
    %597 = vst [vmem:[%s596] sm:$0xff] %v594
    %598 = vst [vmem:[%s596 + $0x8] sm:$0xff] %v595
    %v599 = vmul.f32 %v520, %v587
    %v600 = vadd.f32 %v599, %v591
    %601 = vst [vmem:[%s8 + $0x2] sm:$0x1] %v600
    %v602 = vmul.f32 %v533, %v587
    %v603 = vadd.f32 %v602, %v591
    %604 = vst [vmem:[%s8 + $0x5] sm:$0x1] %v603
    // Predicated region
    $region54: #{model_forward.1} parent=1 // pred_check
      _
    $region55: #{model_forward.1} parent=1 // pred_check_branch
      %606 = sbr.rel (0) target = $region57
    $region56: #{model_forward.1} parent=1 // pred_region
      _
    $region57: #{model_forward.1} parent=1 // pred_fallthru
      _
    // Predicated region
    $region58: #{model_forward.1} parent=1 // pred_check
      _
    $region59: #{model_forward.1} parent=1 // pred_check_branch
      %608 = sbr.rel (0) target = $region61
    $region60: #{model_forward.1} parent=1 // pred_region
      _
    $region61: #{model_forward.1} parent=1 // pred_fallthru
      _
    // Predicated region
    $region62: #{model_forward.1} parent=1 // pred_check
      _
    $region63: #{model_forward.1} parent=1 // pred_check_branch
      %610 = sbr.rel (0) target = $region65
    $region64: #{model_forward.1} parent=1 // pred_region
      _
    $region65: #{model_forward.1} parent=1 // pred_fallthru
      _
    // Predicated region
    $region66: #{model_forward.1} parent=1 // pred_check
      _
    $region67: #{model_forward.1} parent=1 // pred_check_branch
      %612 = sbr.rel (0) target = $region69
    $region68: #{model_forward.1} parent=1 // pred_region
      _
    $region69: #{model_forward.1} parent=1 // pred_fallthru
      _
    %613 = vsyncpa [#allocation3], 1
    %614 = vsyncpa [#allocation5], 1
    %615 = vsyncpa [#allocation8], 1
    %616 = vsyncpa [#allocation11], 1

</llo_original>
